<compile_context>
chip_gen: v5e
topology: v5e:2x2
jax: 0.10.0
libtpu: 0.0.40
codegen_flags: <defaults>
</compile_context>

<pallas_src>
import jax
import jax.numpy as jnp
from jax.experimental import pallas as pl
from jax.experimental.pallas import tpu as pltpu

BATCH = 32          # == hidden_size in the PyTorch module
INPUT_SIZE = 6
HIDDEN = BATCH
SEQ = 8


def lstm_kernel(x_ref, wih_ref, whh_ref, b_ref, wout_ref, bout_ref,
                out_ref, xproj_ref):
    """Single-invocation LSTM + Linear head.

    x_ref    : (T*B, I)   inputs, time-major rows (rows t*B .. t*B+B-1)
    wih_ref  : (I, 4H)    input->gates weights (transposed, gate order i,f,g,o)
    whh_ref  : (H, 4H)    hidden->gates weights (transposed)
    b_ref    : (1, 4H)    b_ih + b_hh
    wout_ref : (1, H)     output linear weight (PyTorch layout)
    bout_ref : (1, 1)     output linear bias
    out_ref  : (B, 1)     final output
    xproj_ref: (T*B, 4H)  VMEM scratch for the batched input projection
    """
    B = out_ref.shape[0]
    H = whh_ref.shape[0]
    T = x_ref.shape[0] // B

    # Hoist all weight loads out of the recurrence (loaded from VMEM once).
    whh = whh_ref[...]                                   # (H, 4H)
    wout = wout_ref[...]                                 # (1, H)
    bout = bout_ref[...]                                 # (1, 1)

    # One batched MXU matmul for ALL time steps, bias fused here.
    xproj_ref[...] = (
        jnp.dot(x_ref[...], wih_ref[...], preferred_element_type=jnp.float32)
        + b_ref[...])                                    # (T*B, 4H)

    # Recurrence: fully unrolled (T=8 static), h/c live in vregs.
    # PyTorch module zero-inits h0/c0 every forward.
    h = jnp.zeros((B, H), jnp.float32)
    c = jnp.zeros((B, H), jnp.float32)
    for t in range(T):                                   # static unroll
        gates = (xproj_ref[t * B:(t + 1) * B, :]
                 + jnp.dot(h, whh,
                           preferred_element_type=jnp.float32))  # (B, 4H)

        # Two full-vreg EUP passes, then static lane slices (i, f, g, o).
        sig = jax.nn.sigmoid(gates)
        tah = jnp.tanh(gates)
        i_g = sig[:, 0 * H:1 * H]
        f_g = sig[:, 1 * H:2 * H]
        g_g = tah[:, 2 * H:3 * H]
        o_g = sig[:, 3 * H:4 * H]

        c = f_g * c + i_g * g_g
        h = o_g * jnp.tanh(c)

    # Output head: elementwise mul + cross-lane reduce (avoids N=1 matmul).
    out_ref[...] = (jnp.sum(h * wout, axis=1, keepdims=True)
                    + bout)                              # (B, 1)


@jax.jit
def rnn_forward(x, w_ih, w_hh, b_ih, b_hh, w_out, b_out):
    """x: (B, T, I) float32 (batch_first).  Returns (B, 1) float32."""
    B, T, I = x.shape
    H = w_hh.shape[1]

    # Layout prep (one-time XLA ops outside the kernel).
    x_flat = jnp.transpose(x, (1, 0, 2)).reshape(T * B, I)   # time-major rows
    wih_t = w_ih.T                                           # (I, 4H)
    whh_t = w_hh.T                                           # (H, 4H)
    b = (b_ih + b_hh).reshape(1, 4 * H)                      # (1, 4H)
    bout = b_out.reshape(1, 1)                               # (1, 1)

    vmem = pl.BlockSpec(memory_space=pltpu.MemorySpace.VMEM)
    out = pl.pallas_call(
        lstm_kernel,
        out_shape=jax.ShapeDtypeStruct((B, 1), jnp.float32),
        in_specs=[vmem, vmem, vmem, vmem, vmem, vmem],
        out_specs=vmem,
        scratch_shapes=[pltpu.VMEM((T * B, 4 * H), jnp.float32)],
    )(x_flat, wih_t, whh_t, b, w_out, bout)
    return out


def rnn_reference(x, w_ih, w_hh, b_ih, b_hh, w_out, b_out):
    """Pure-JAX reference matching torch.nn.LSTM + nn.Linear semantics."""
    B, T, I = x.shape
    H = w_hh.shape[1]
    h = jnp.zeros((B, H), jnp.float32)
    c = jnp.zeros((B, H), jnp.float32)
    for t in range(T):
        gates = x[:, t, :] @ w_ih.T + b_ih + h @ w_hh.T + b_hh
        i_g = jax.nn.sigmoid(gates[:, 0 * H:1 * H])
        f_g = jax.nn.sigmoid(gates[:, 1 * H:2 * H])
        g_g = jnp.tanh(gates[:, 2 * H:3 * H])
        o_g = jax.nn.sigmoid(gates[:, 3 * H:4 * H])
        c = f_g * c + i_g * g_g
        h = o_g * jnp.tanh(c)
    return h @ w_out.T + b_out


if __name__ == "__main__":
    key = jax.random.PRNGKey(0)
    ks = jax.random.split(key, 7)
    bound = 1.0 / jnp.sqrt(HIDDEN)

    # Deterministic synthetic parameters (same shapes as nn.LSTM / nn.Linear).
    w_ih = jax.random.uniform(ks[0], (4 * HIDDEN, INPUT_SIZE), jnp.float32,
                              -bound, bound)
    w_hh = jax.random.uniform(ks[1], (4 * HIDDEN, HIDDEN), jnp.float32,
                              -bound, bound)
    b_ih = jax.random.uniform(ks[2], (4 * HIDDEN,), jnp.float32, -bound, bound)
    b_hh = jax.random.uniform(ks[3], (4 * HIDDEN,), jnp.float32, -bound, bound)
    w_out = jax.random.uniform(ks[4], (1, HIDDEN), jnp.float32, -bound, bound)
    b_out = jax.random.uniform(ks[5], (1,), jnp.float32, -bound, bound)

    # Input: batch must equal BATCH=32 (the module hard-codes h0 with BATCH).
    x = jax.random.normal(ks[6], (BATCH, SEQ, INPUT_SIZE), jnp.float32)

    y = rnn_forward(x, w_ih, w_hh, b_ih, b_hh, w_out, b_out)
    jax.block_until_ready(y)

    y_ref = rnn_reference(x, w_ih, w_hh, b_ih, b_hh, w_out, b_out)
    assert y.shape == (BATCH, 1)
    assert jnp.allclose(y, y_ref, atol=1e-5, rtol=1e-5), (
        f"max err {jnp.max(jnp.abs(y - y_ref))}")

    print("KERNEL_OK")
</pallas_src>

<mosaic_0001>
module attributes {stable_mosaic.version = 11 : i64} {
  func.func @lstm_kernel(%arg0: memref<256x6xf32, #tpu.memory_space<vmem>>, %arg1: memref<6x128xf32, #tpu.memory_space<vmem>>, %arg2: memref<32x128xf32, #tpu.memory_space<vmem>>, %arg3: memref<1x128xf32, #tpu.memory_space<vmem>>, %arg4: memref<1x32xf32, #tpu.memory_space<vmem>>, %arg5: memref<1x1xf32, #tpu.memory_space<vmem>>, %arg6: memref<32x1xf32, #tpu.memory_space<vmem>>, %arg7: memref<256x128xf32, #tpu.memory_space<vmem>>) attributes {dimension_semantics = [], scalar_prefetch = 0 : i64, scratch_operands = 1 : i64, tpu.core_type = #tpu.core_type<tc>} {
    %c0 = arith.constant 0 : index
    %c0_0 = arith.constant 0 : index
    %0 = vector.load %arg2[%c0, %c0_0] : memref<32x128xf32, #tpu.memory_space<vmem>>, vector<32x128xf32>
    %c0_1 = arith.constant 0 : index
    %c0_2 = arith.constant 0 : index
    %1 = vector.load %arg4[%c0_1, %c0_2] : memref<1x32xf32, #tpu.memory_space<vmem>>, vector<1x32xf32>
    %c0_3 = arith.constant 0 : index
    %c0_4 = arith.constant 0 : index
    %2 = vector.load %arg5[%c0_3, %c0_4] : memref<1x1xf32, #tpu.memory_space<vmem>>, vector<1x1xf32>
    %c0_5 = arith.constant 0 : index
    %c0_6 = arith.constant 0 : index
    %3 = vector.load %arg0[%c0_5, %c0_6] : memref<256x6xf32, #tpu.memory_space<vmem>>, vector<256x6xf32>
    %c0_7 = arith.constant 0 : index
    %c0_8 = arith.constant 0 : index
    %4 = vector.load %arg1[%c0_7, %c0_8] : memref<6x128xf32, #tpu.memory_space<vmem>>, vector<6x128xf32>
    %cst = arith.constant dense<0.000000e+00> : vector<256x128xf32>
    %5 = tpu.matmul %3, %4, %cst {dimension_numbers = #tpu.dot_dimension_numbers<[1], [0], [0], [1], [0, 0, 1, 1], [], []>} : vector<256x6xf32>, vector<6x128xf32>, vector<256x128xf32> -> vector<256x128xf32>
    %c0_9 = arith.constant 0 : index
    %c0_10 = arith.constant 0 : index
    %6 = vector.load %arg3[%c0_9, %c0_10] : memref<1x128xf32, #tpu.memory_space<vmem>>, vector<1x128xf32>
    %7 = vector.broadcast %6 : vector<1x128xf32> to vector<256x128xf32>
    %8 = arith.addf %5, %7 : vector<256x128xf32>
    %c0_11 = arith.constant 0 : index
    %c0_12 = arith.constant 0 : index
    %9 = vector.load %arg7[%c0_11, %c0_12] : memref<256x128xf32, #tpu.memory_space<vmem>>, vector<256x128xf32>
    tpu.vector_store %arg7[%c0_11, %c0_12], %8 {strides = array<i32>} : memref<256x128xf32, #tpu.memory_space<vmem>>, vector<256x128xf32>,
    %cst_13 = arith.constant 0.000000e+00 : f32
    %10 = vector.broadcast %cst_13 : f32 to vector<32x32xf32>
    %cst_14 = arith.constant 0.000000e+00 : f32
    %11 = vector.broadcast %cst_14 : f32 to vector<32x32xf32>
    %c0_15 = arith.constant 0 : index
    %c0_16 = arith.constant 0 : index
    %12 = vector.load %arg7[%c0_15, %c0_16] : memref<256x128xf32, #tpu.memory_space<vmem>>, vector<32x128xf32>
    %cst_17 = arith.constant dense<0.000000e+00> : vector<32x128xf32>
    %13 = tpu.matmul %10, %0, %cst_17 {dimension_numbers = #tpu.dot_dimension_numbers<[1], [0], [0], [1], [0, 0, 1, 1], [], []>} : vector<32x32xf32>, vector<32x128xf32>, vector<32x128xf32> -> vector<32x128xf32>
    %14 = arith.addf %12, %13 : vector<32x128xf32>
    %15 = arith.negf %14 : vector<32x128xf32>
    %16 = math.exp %15 : vector<32x128xf32>
    %cst_18 = arith.constant 1.000000e+00 : f32
    %17 = vector.broadcast %cst_18 : f32 to vector<32x128xf32>
    %18 = arith.addf %17, %16 : vector<32x128xf32>
    %19 = arith.divf %17, %18 : vector<32x128xf32>
    %20 = math.tanh %14 : vector<32x128xf32>
    %21 = vector.extract_strided_slice %19 {offsets = [0, 0], sizes = [32, 32], strides = [1, 1]} : vector<32x128xf32> to vector<32x32xf32>
    %22 = vector.extract_strided_slice %19 {offsets = [0, 32], sizes = [32, 32], strides = [1, 1]} : vector<32x128xf32> to vector<32x32xf32>
    %23 = vector.extract_strided_slice %20 {offsets = [0, 64], sizes = [32, 32], strides = [1, 1]} : vector<32x128xf32> to vector<32x32xf32>
    %24 = vector.extract_strided_slice %19 {offsets = [0, 96], sizes = [32, 32], strides = [1, 1]} : vector<32x128xf32> to vector<32x32xf32>
    %25 = arith.mulf %22, %11 : vector<32x32xf32>
    %26 = arith.mulf %21, %23 : vector<32x32xf32>
    %27 = arith.addf %25, %26 : vector<32x32xf32>
    %28 = math.tanh %27 : vector<32x32xf32>
    %29 = arith.mulf %24, %28 : vector<32x32xf32>
    %c32 = arith.constant 32 : index
    %c0_19 = arith.constant 0 : index
    %30 = vector.load %arg7[%c32, %c0_19] : memref<256x128xf32, #tpu.memory_space<vmem>>, vector<32x128xf32>
    %cst_20 = arith.constant dense<0.000000e+00> : vector<32x128xf32>
    %31 = tpu.matmul %29, %0, %cst_20 {dimension_numbers = #tpu.dot_dimension_numbers<[1], [0], [0], [1], [0, 0, 1, 1], [], []>} : vector<32x32xf32>, vector<32x128xf32>, vector<32x128xf32> -> vector<32x128xf32>
    %32 = arith.addf %30, %31 : vector<32x128xf32>
    %33 = arith.negf %32 : vector<32x128xf32>
    %34 = math.exp %33 : vector<32x128xf32>
    %cst_21 = arith.constant 1.000000e+00 : f32
    %35 = vector.broadcast %cst_21 : f32 to vector<32x128xf32>
    %36 = arith.addf %35, %34 : vector<32x128xf32>
    %37 = arith.divf %35, %36 : vector<32x128xf32>
    %38 = math.tanh %32 : vector<32x128xf32>
    %39 = vector.extract_strided_slice %37 {offsets = [0, 0], sizes = [32, 32], strides = [1, 1]} : vector<32x128xf32> to vector<32x32xf32>
    %40 = vector.extract_strided_slice %37 {offsets = [0, 32], sizes = [32, 32], strides = [1, 1]} : vector<32x128xf32> to vector<32x32xf32>
    %41 = vector.extract_strided_slice %38 {offsets = [0, 64], sizes = [32, 32], strides = [1, 1]} : vector<32x128xf32> to vector<32x32xf32>
    %42 = vector.extract_strided_slice %37 {offsets = [0, 96], sizes = [32, 32], strides = [1, 1]} : vector<32x128xf32> to vector<32x32xf32>
    %43 = arith.mulf %40, %27 : vector<32x32xf32>
    %44 = arith.mulf %39, %41 : vector<32x32xf32>
    %45 = arith.addf %43, %44 : vector<32x32xf32>
    %46 = math.tanh %45 : vector<32x32xf32>
    %47 = arith.mulf %42, %46 : vector<32x32xf32>
    %c64 = arith.constant 64 : index
    %c0_22 = arith.constant 0 : index
    %48 = vector.load %arg7[%c64, %c0_22] : memref<256x128xf32, #tpu.memory_space<vmem>>, vector<32x128xf32>
    %cst_23 = arith.constant dense<0.000000e+00> : vector<32x128xf32>
    %49 = tpu.matmul %47, %0, %cst_23 {dimension_numbers = #tpu.dot_dimension_numbers<[1], [0], [0], [1], [0, 0, 1, 1], [], []>} : vector<32x32xf32>, vector<32x128xf32>, vector<32x128xf32> -> vector<32x128xf32>
    %50 = arith.addf %48, %49 : vector<32x128xf32>
    %51 = arith.negf %50 : vector<32x128xf32>
    %52 = math.exp %51 : vector<32x128xf32>
    %cst_24 = arith.constant 1.000000e+00 : f32
    %53 = vector.broadcast %cst_24 : f32 to vector<32x128xf32>
    %54 = arith.addf %53, %52 : vector<32x128xf32>
    %55 = arith.divf %53, %54 : vector<32x128xf32>
    %56 = math.tanh %50 : vector<32x128xf32>
    %57 = vector.extract_strided_slice %55 {offsets = [0, 0], sizes = [32, 32], strides = [1, 1]} : vector<32x128xf32> to vector<32x32xf32>
    %58 = vector.extract_strided_slice %55 {offsets = [0, 32], sizes = [32, 32], strides = [1, 1]} : vector<32x128xf32> to vector<32x32xf32>
    %59 = vector.extract_strided_slice %56 {offsets = [0, 64], sizes = [32, 32], strides = [1, 1]} : vector<32x128xf32> to vector<32x32xf32>
    %60 = vector.extract_strided_slice %55 {offsets = [0, 96], sizes = [32, 32], strides = [1, 1]} : vector<32x128xf32> to vector<32x32xf32>
    %61 = arith.mulf %58, %45 : vector<32x32xf32>
    %62 = arith.mulf %57, %59 : vector<32x32xf32>
    %63 = arith.addf %61, %62 : vector<32x32xf32>
    %64 = math.tanh %63 : vector<32x32xf32>
    %65 = arith.mulf %60, %64 : vector<32x32xf32>
    %c96 = arith.constant 96 : index
    %c0_25 = arith.constant 0 : index
    %66 = vector.load %arg7[%c96, %c0_25] : memref<256x128xf32, #tpu.memory_space<vmem>>, vector<32x128xf32>
    %cst_26 = arith.constant dense<0.000000e+00> : vector<32x128xf32>
    %67 = tpu.matmul %65, %0, %cst_26 {dimension_numbers = #tpu.dot_dimension_numbers<[1], [0], [0], [1], [0, 0, 1, 1], [], []>} : vector<32x32xf32>, vector<32x128xf32>, vector<32x128xf32> -> vector<32x128xf32>
    %68 = arith.addf %66, %67 : vector<32x128xf32>
    %69 = arith.negf %68 : vector<32x128xf32>
    %70 = math.exp %69 : vector<32x128xf32>
    %cst_27 = arith.constant 1.000000e+00 : f32
    %71 = vector.broadcast %cst_27 : f32 to vector<32x128xf32>
    %72 = arith.addf %71, %70 : vector<32x128xf32>
    %73 = arith.divf %71, %72 : vector<32x128xf32>
    %74 = math.tanh %68 : vector<32x128xf32>
    %75 = vector.extract_strided_slice %73 {offsets = [0, 0], sizes = [32, 32], strides = [1, 1]} : vector<32x128xf32> to vector<32x32xf32>
    %76 = vector.extract_strided_slice %73 {offsets = [0, 32], sizes = [32, 32], strides = [1, 1]} : vector<32x128xf32> to vector<32x32xf32>
    %77 = vector.extract_strided_slice %74 {offsets = [0, 64], sizes = [32, 32], strides = [1, 1]} : vector<32x128xf32> to vector<32x32xf32>
    %78 = vector.extract_strided_slice %73 {offsets = [0, 96], sizes = [32, 32], strides = [1, 1]} : vector<32x128xf32> to vector<32x32xf32>
    %79 = arith.mulf %76, %63 : vector<32x32xf32>
    %80 = arith.mulf %75, %77 : vector<32x32xf32>
    %81 = arith.addf %79, %80 : vector<32x32xf32>
    %82 = math.tanh %81 : vector<32x32xf32>
    %83 = arith.mulf %78, %82 : vector<32x32xf32>
    %c128 = arith.constant 128 : index
    %c0_28 = arith.constant 0 : index
    %84 = vector.load %arg7[%c128, %c0_28] : memref<256x128xf32, #tpu.memory_space<vmem>>, vector<32x128xf32>
    %cst_29 = arith.constant dense<0.000000e+00> : vector<32x128xf32>
    %85 = tpu.matmul %83, %0, %cst_29 {dimension_numbers = #tpu.dot_dimension_numbers<[1], [0], [0], [1], [0, 0, 1, 1], [], []>} : vector<32x32xf32>, vector<32x128xf32>, vector<32x128xf32> -> vector<32x128xf32>
    %86 = arith.addf %84, %85 : vector<32x128xf32>
    %87 = arith.negf %86 : vector<32x128xf32>
    %88 = math.exp %87 : vector<32x128xf32>
    %cst_30 = arith.constant 1.000000e+00 : f32
    %89 = vector.broadcast %cst_30 : f32 to vector<32x128xf32>
    %90 = arith.addf %89, %88 : vector<32x128xf32>
    %91 = arith.divf %89, %90 : vector<32x128xf32>
    %92 = math.tanh %86 : vector<32x128xf32>
    %93 = vector.extract_strided_slice %91 {offsets = [0, 0], sizes = [32, 32], strides = [1, 1]} : vector<32x128xf32> to vector<32x32xf32>
    %94 = vector.extract_strided_slice %91 {offsets = [0, 32], sizes = [32, 32], strides = [1, 1]} : vector<32x128xf32> to vector<32x32xf32>
    %95 = vector.extract_strided_slice %92 {offsets = [0, 64], sizes = [32, 32], strides = [1, 1]} : vector<32x128xf32> to vector<32x32xf32>
    %96 = vector.extract_strided_slice %91 {offsets = [0, 96], sizes = [32, 32], strides = [1, 1]} : vector<32x128xf32> to vector<32x32xf32>
    %97 = arith.mulf %94, %81 : vector<32x32xf32>
    %98 = arith.mulf %93, %95 : vector<32x32xf32>
    %99 = arith.addf %97, %98 : vector<32x32xf32>
    %100 = math.tanh %99 : vector<32x32xf32>
    %101 = arith.mulf %96, %100 : vector<32x32xf32>
    %c160 = arith.constant 160 : index
    %c0_31 = arith.constant 0 : index
    %102 = vector.load %arg7[%c160, %c0_31] : memref<256x128xf32, #tpu.memory_space<vmem>>, vector<32x128xf32>
    %cst_32 = arith.constant dense<0.000000e+00> : vector<32x128xf32>
    %103 = tpu.matmul %101, %0, %cst_32 {dimension_numbers = #tpu.dot_dimension_numbers<[1], [0], [0], [1], [0, 0, 1, 1], [], []>} : vector<32x32xf32>, vector<32x128xf32>, vector<32x128xf32> -> vector<32x128xf32>
    %104 = arith.addf %102, %103 : vector<32x128xf32>
    %105 = arith.negf %104 : vector<32x128xf32>
    %106 = math.exp %105 : vector<32x128xf32>
    %cst_33 = arith.constant 1.000000e+00 : f32
    %107 = vector.broadcast %cst_33 : f32 to vector<32x128xf32>
    %108 = arith.addf %107, %106 : vector<32x128xf32>
    %109 = arith.divf %107, %108 : vector<32x128xf32>
    %110 = math.tanh %104 : vector<32x128xf32>
    %111 = vector.extract_strided_slice %109 {offsets = [0, 0], sizes = [32, 32], strides = [1, 1]} : vector<32x128xf32> to vector<32x32xf32>
    %112 = vector.extract_strided_slice %109 {offsets = [0, 32], sizes = [32, 32], strides = [1, 1]} : vector<32x128xf32> to vector<32x32xf32>
    %113 = vector.extract_strided_slice %110 {offsets = [0, 64], sizes = [32, 32], strides = [1, 1]} : vector<32x128xf32> to vector<32x32xf32>
    %114 = vector.extract_strided_slice %109 {offsets = [0, 96], sizes = [32, 32], strides = [1, 1]} : vector<32x128xf32> to vector<32x32xf32>
    %115 = arith.mulf %112, %99 : vector<32x32xf32>
    %116 = arith.mulf %111, %113 : vector<32x32xf32>
    %117 = arith.addf %115, %116 : vector<32x32xf32>
    %118 = math.tanh %117 : vector<32x32xf32>
    %119 = arith.mulf %114, %118 : vector<32x32xf32>
    %c192 = arith.constant 192 : index
    %c0_34 = arith.constant 0 : index
    %120 = vector.load %arg7[%c192, %c0_34] : memref<256x128xf32, #tpu.memory_space<vmem>>, vector<32x128xf32>
    %cst_35 = arith.constant dense<0.000000e+00> : vector<32x128xf32>
    %121 = tpu.matmul %119, %0, %cst_35 {dimension_numbers = #tpu.dot_dimension_numbers<[1], [0], [0], [1], [0, 0, 1, 1], [], []>} : vector<32x32xf32>, vector<32x128xf32>, vector<32x128xf32> -> vector<32x128xf32>
    %122 = arith.addf %120, %121 : vector<32x128xf32>
    %123 = arith.negf %122 : vector<32x128xf32>
    %124 = math.exp %123 : vector<32x128xf32>
    %cst_36 = arith.constant 1.000000e+00 : f32
    %125 = vector.broadcast %cst_36 : f32 to vector<32x128xf32>
    %126 = arith.addf %125, %124 : vector<32x128xf32>
    %127 = arith.divf %125, %126 : vector<32x128xf32>
    %128 = math.tanh %122 : vector<32x128xf32>
    %129 = vector.extract_strided_slice %127 {offsets = [0, 0], sizes = [32, 32], strides = [1, 1]} : vector<32x128xf32> to vector<32x32xf32>
    %130 = vector.extract_strided_slice %127 {offsets = [0, 32], sizes = [32, 32], strides = [1, 1]} : vector<32x128xf32> to vector<32x32xf32>
    %131 = vector.extract_strided_slice %128 {offsets = [0, 64], sizes = [32, 32], strides = [1, 1]} : vector<32x128xf32> to vector<32x32xf32>
    %132 = vector.extract_strided_slice %127 {offsets = [0, 96], sizes = [32, 32], strides = [1, 1]} : vector<32x128xf32> to vector<32x32xf32>
    %133 = arith.mulf %130, %117 : vector<32x32xf32>
    %134 = arith.mulf %129, %131 : vector<32x32xf32>
    %135 = arith.addf %133, %134 : vector<32x32xf32>
    %136 = math.tanh %135 : vector<32x32xf32>
    %137 = arith.mulf %132, %136 : vector<32x32xf32>
    %c224 = arith.constant 224 : index
    %c0_37 = arith.constant 0 : index
    %138 = vector.load %arg7[%c224, %c0_37] : memref<256x128xf32, #tpu.memory_space<vmem>>, vector<32x128xf32>
    %cst_38 = arith.constant dense<0.000000e+00> : vector<32x128xf32>
    %139 = tpu.matmul %137, %0, %cst_38 {dimension_numbers = #tpu.dot_dimension_numbers<[1], [0], [0], [1], [0, 0, 1, 1], [], []>} : vector<32x32xf32>, vector<32x128xf32>, vector<32x128xf32> -> vector<32x128xf32>
    %140 = arith.addf %138, %139 : vector<32x128xf32>
    %141 = arith.negf %140 : vector<32x128xf32>
    %142 = math.exp %141 : vector<32x128xf32>
    %cst_39 = arith.constant 1.000000e+00 : f32
    %143 = vector.broadcast %cst_39 : f32 to vector<32x128xf32>
    %144 = arith.addf %143, %142 : vector<32x128xf32>
    %145 = arith.divf %143, %144 : vector<32x128xf32>
    %146 = math.tanh %140 : vector<32x128xf32>
    %147 = vector.extract_strided_slice %145 {offsets = [0, 0], sizes = [32, 32], strides = [1, 1]} : vector<32x128xf32> to vector<32x32xf32>
    %148 = vector.extract_strided_slice %145 {offsets = [0, 32], sizes = [32, 32], strides = [1, 1]} : vector<32x128xf32> to vector<32x32xf32>
    %149 = vector.extract_strided_slice %146 {offsets = [0, 64], sizes = [32, 32], strides = [1, 1]} : vector<32x128xf32> to vector<32x32xf32>
    %150 = vector.extract_strided_slice %145 {offsets = [0, 96], sizes = [32, 32], strides = [1, 1]} : vector<32x128xf32> to vector<32x32xf32>
    %151 = arith.mulf %148, %135 : vector<32x32xf32>
    %152 = arith.mulf %147, %149 : vector<32x32xf32>
    %153 = arith.addf %151, %152 : vector<32x32xf32>
    %154 = math.tanh %153 : vector<32x32xf32>
    %155 = arith.mulf %150, %154 : vector<32x32xf32>
    %156 = vector.broadcast %1 : vector<1x32xf32> to vector<32x32xf32>
    %157 = arith.mulf %155, %156 : vector<32x32xf32>
    %cst_40 = arith.constant dense<0.000000e+00> : vector<32xf32>
    %158 = vector.multi_reduction <add>, %157, %cst_40 [1] : vector<32x32xf32> to vector<32xf32>
    %159 = vector.shape_cast %158 : vector<32xf32> to vector<32x1xf32>
    %160 = vector.broadcast %2 : vector<1x1xf32> to vector<32x1xf32>
    %161 = arith.addf %159, %160 : vector<32x1xf32>
    %c0_41 = arith.constant 0 : index
    %c0_42 = arith.constant 0 : index
    %162 = vector.load %arg6[%c0_41, %c0_42] : memref<32x1xf32, #tpu.memory_space<vmem>>, vector<32x1xf32>
    tpu.vector_store %arg6[%c0_41, %c0_42], %161 {strides = array<i32>} : memref<32x1xf32, #tpu.memory_space<vmem>>, vector<32x1xf32>,
    return
  }
}

</mosaic_0001>

<llo_original>
// kernel: rnn_forward.1
$region0: #{rnn_forward.1}
  #allocation0 [shape = 'u32[]', space=smem, size = 0x4, offset = 0x4, fixed_abs, tag = 'smem constant byte address 0x4 - core index']
  #allocation1 [shape = 'u32[72,128]{1,0:T(1,128)}', space=vmem, size = 0x9000, scoped, tag = 'internal scratch']
  #allocation2 [shape = 'f32[256,128]{1,0:T(8,128)}', space=vmem, size = 0x20000, scoped, tag = 'scratch operand']
  #allocation3 [shape = 'f32[1,1]{1,0:T(1,128)S(1)}', space=vmem, size = 0x200, scoped, tag = 'scoped memory for rnn_forward.1']
  %s0 = inlined_call_operand.vmem [shape: f32[256,6], index: 0, kind: input, shape index: {}]
  %s1 = inlined_call_operand.vmem [shape: f32[6,128], index: 1, kind: input, shape index: {}]
  %s2 = inlined_call_operand.vmem [shape: f32[32,128], index: 2, kind: input, shape index: {}]
  %s3 = inlined_call_operand.vmem [shape: f32[1,128], index: 3, kind: input, shape index: {}]
  %s4 = inlined_call_operand.vmem [shape: f32[1,32], index: 4, kind: input, shape index: {}]
  %s5 = inlined_call_operand.<no memory space> [shape: f32[1,1], index: 5, kind: input, shape index: {}]
  %s6 = inlined_call_operand.vmem [shape: f32[32,1], index: 6, kind: output, shape index: {}]
  %s7 = sld [smem:[#allocation0]]
  $region34: #{rnn_forward.1} parent=0
    _
  %s9 = ssub.s32 1, %s7
  %s10 = scalar_select 0, %s9, %s7
  %v11 = vstv %s5
  %12 = vst [vmem:[#allocation3] sm:$0x1] %v11
  // Predicated region
  $region2: #{rnn_forward.1} parent=0 // pred_check
    _
  $region3: #{rnn_forward.1} parent=0 // pred_check_branch
    %14 = sbr.rel (0) target = $region5
  $region4: #{rnn_forward.1} parent=0 // pred_region
    _
  $region5: #{rnn_forward.1} parent=0 // pred_fallthru
    _
  // Predicated region
  $region6: #{rnn_forward.1} parent=0 // pred_check
    _
  $region7: #{rnn_forward.1} parent=0 // pred_check_branch
    %16 = sbr.rel (0) target = $region9
  $region8: #{rnn_forward.1} parent=0 // pred_region
    _
  $region9: #{rnn_forward.1} parent=0 // pred_fallthru
    _
  // Predicated region
  $region10: #{rnn_forward.1} parent=0 // pred_check
    _
  $region11: #{rnn_forward.1} parent=0 // pred_check_branch
    %18 = sbr.rel (0) target = $region13
  $region12: #{rnn_forward.1} parent=0 // pred_region
    _
  $region13: #{rnn_forward.1} parent=0 // pred_fallthru
    _
  // Predicated region
  $region14: #{rnn_forward.1} parent=0 // pred_check
    _
  $region15: #{rnn_forward.1} parent=0 // pred_check_branch
    %20 = sbr.rel (0) target = $region17
  $region16: #{rnn_forward.1} parent=0 // pred_region
    _
  $region17: #{rnn_forward.1} parent=0 // pred_fallthru
    _
  // Predicated region
  $region18: #{rnn_forward.1} parent=0 // pred_check
    _
  $region19: #{rnn_forward.1} parent=0 // pred_check_branch
    %22 = sbr.rel (0) target = $region21
  $region20: #{rnn_forward.1} parent=0 // pred_region
    _
  $region21: #{rnn_forward.1} parent=0 // pred_fallthru
    _
  // Predicated region
  $region22: #{rnn_forward.1} parent=0 // pred_check
    _
  $region23: #{rnn_forward.1} parent=0 // pred_check_branch
    %24 = sbr.rel (0) target = $region25
  $region24: #{rnn_forward.1} parent=0 // pred_region
    _
  $region25: #{rnn_forward.1} parent=0 // pred_fallthru
    _
  %v25 = vld [vmem:[%s2] sm:$0xff]
  %v26 = vld [vmem:[%s2 + $0x8] sm:$0xff]
  %v27 = vld [vmem:[%s2 + $0x10] sm:$0xff]
  %v28 = vld [vmem:[%s2 + $0x18] sm:$0xff]
  %v29 = vld [vmem:[%s4] sm:$0x1]
  %v30 = vld [vmem:[#allocation3] sm:$0x1]
  %v31 = vld [vmem:[%s0] sm:$0xff]
  %v32 = vld [vmem:[%s0 + $0x8] sm:$0xff]
  %v33 = vld [vmem:[%s0 + $0x10] sm:$0xff]
  %v34 = vld [vmem:[%s0 + $0x18] sm:$0xff]
  %v35 = vld [vmem:[%s0 + $0x20] sm:$0xff]
  %v36 = vld [vmem:[%s0 + $0x28] sm:$0xff]
  %v37 = vld [vmem:[%s0 + $0x30] sm:$0xff]
  %v38 = vld [vmem:[%s0 + $0x38] sm:$0xff]
  %v39 = vld [vmem:[%s0 + $0x40] sm:$0xff]
  %v40 = vld [vmem:[%s0 + $0x48] sm:$0xff]
  %v41 = vld [vmem:[%s0 + $0x50] sm:$0xff]
  %v42 = vld [vmem:[%s0 + $0x58] sm:$0xff]
  %v43 = vld [vmem:[%s0 + $0x60] sm:$0xff]
  %v44 = vld [vmem:[%s0 + $0x68] sm:$0xff]
  %v45 = vld [vmem:[%s0 + $0x70] sm:$0xff]
  %v46 = vld [vmem:[%s0 + $0x78] sm:$0xff]
  %v47 = vld [vmem:[%s0 + $0x80] sm:$0xff]
  %v48 = vld [vmem:[%s0 + $0x88] sm:$0xff]
  %v49 = vld [vmem:[%s0 + $0x90] sm:$0xff]
  %v50 = vld [vmem:[%s0 + $0x98] sm:$0xff]
  %v51 = vld [vmem:[%s0 + $0xa0] sm:$0xff]
  %v52 = vld [vmem:[%s0 + $0xa8] sm:$0xff]
  %v53 = vld [vmem:[%s0 + $0xb0] sm:$0xff]
  %v54 = vld [vmem:[%s0 + $0xb8] sm:$0xff]
  %v55 = vld [vmem:[%s0 + $0xc0] sm:$0xff]
  %v56 = vld [vmem:[%s0 + $0xc8] sm:$0xff]
  %v57 = vld [vmem:[%s0 + $0xd0] sm:$0xff]
  %v58 = vld [vmem:[%s0 + $0xd8] sm:$0xff]
  %v59 = vld [vmem:[%s0 + $0xe0] sm:$0xff]
  %v60 = vld [vmem:[%s0 + $0xe8] sm:$0xff]
  %v61 = vld [vmem:[%s0 + $0xf0] sm:$0xff]
  %v62 = vld [vmem:[%s0 + $0xf8] sm:$0xff]
  %v63 = vld [vmem:[%s1] sm:$0x3f]
  %v64 = vld [vmem:[%s3] sm:$0x1]
  %v66 = vperm.slane %v64, 0
  %vm68 = vcmask 48128
  %v70 = vsel %vm68, %v31, 0
  %v73 = vsel %vm68, %v32, 0
  %v76 = vsel %vm68, %v33, 0
  %v79 = vsel %vm68, %v34, 0
  %v82 = vsel %vm68, %v35, 0
  %v85 = vsel %vm68, %v36, 0
  %v88 = vsel %vm68, %v37, 0
  %v91 = vsel %vm68, %v38, 0
  %v94 = vsel %vm68, %v39, 0
  %v97 = vsel %vm68, %v40, 0
  %v100 = vsel %vm68, %v41, 0
  %v103 = vsel %vm68, %v42, 0
  %v106 = vsel %vm68, %v43, 0
  %v109 = vsel %vm68, %v44, 0
  %v112 = vsel %vm68, %v45, 0
  %v115 = vsel %vm68, %v46, 0
  %v118 = vsel %vm68, %v47, 0
  %v121 = vsel %vm68, %v48, 0
  %v124 = vsel %vm68, %v49, 0
  %v127 = vsel %vm68, %v50, 0
  %v130 = vsel %vm68, %v51, 0
  %v133 = vsel %vm68, %v52, 0
  %v136 = vsel %vm68, %v53, 0
  %v139 = vsel %vm68, %v54, 0
  %v142 = vsel %vm68, %v55, 0
  %v145 = vsel %vm68, %v56, 0
  %v148 = vsel %vm68, %v57, 0
  %v151 = vsel %vm68, %v58, 0
  %v154 = vsel %vm68, %v59, 0
  %v157 = vsel %vm68, %v60, 0
  %v160 = vsel %vm68, %v61, 0
  %v163 = vsel %vm68, %v62, 0
  %vm165 = vcmask 1045504
  %v167 = vsel %vm165, %v63, 0
  %169 = vmatpush.msra.mxu0 0.0
  %170 = vmatpush.msra.mxu0 0.0
  %171 = vmatpush.msra.mxu0 0.0
  %172 = vmatpush.msra.mxu0 0.0
  %173 = vmatpush.msra.mxu0 0.0
  %174 = vmatpush.msra.mxu0 0.0
  %175 = vmatpush.msra.mxu0 0.0
  %176 = vmatpush.msra.mxu0 0.0
  %177 = vmatpush.msra.mxu0 0.0
  %178 = vmatpush.msra.mxu0 0.0
  %179 = vmatpush.msra.mxu0 0.0
  %180 = vmatpush.msra.mxu0 0.0
  %181 = vmatpush.msra.mxu0 0.0
  %182 = vmatpush.msra.mxu0 0.0
  %183 = vmatpush.msra.mxu0 0.0
  %184 = vmatpush.msra.mxu0 %v167
  %185 = vmatmul.f32.gmra.mxu0 %v70
  %v186 = vpop.f32.mrf.mxu0
  %v187 = vadd.f32 %v66, %v186
  %188 = vmatmul.f32.gmra.mxu0 %v73
  %v189 = vpop.f32.mrf.mxu0
  %v190 = vadd.f32 %v66, %v189
  %191 = vmatmul.f32.gmra.mxu0 %v76
  %v192 = vpop.f32.mrf.mxu0
  %v193 = vadd.f32 %v66, %v192
  %194 = vmatmul.f32.gmra.mxu0 %v79
  %v195 = vpop.f32.mrf.mxu0
  %v196 = vadd.f32 %v66, %v195
  %197 = vmatmul.f32.gmra.mxu0 %v82
  %v198 = vpop.f32.mrf.mxu0
  %v199 = vadd.f32 %v66, %v198
  %200 = vmatmul.f32.gmra.mxu0 %v85
  %v201 = vpop.f32.mrf.mxu0
  %v202 = vadd.f32 %v66, %v201
  %203 = vmatmul.f32.gmra.mxu0 %v88
  %v204 = vpop.f32.mrf.mxu0
  %v205 = vadd.f32 %v66, %v204
  %206 = vmatmul.f32.gmra.mxu0 %v91
  %v207 = vpop.f32.mrf.mxu0
  %v208 = vadd.f32 %v66, %v207
  %209 = vmatmul.f32.gmra.mxu0 %v94
  %v210 = vpop.f32.mrf.mxu0
  %v211 = vadd.f32 %v66, %v210
  %212 = vmatmul.f32.gmra.mxu0 %v97
  %v213 = vpop.f32.mrf.mxu0
  %v214 = vadd.f32 %v66, %v213
  %215 = vmatmul.f32.gmra.mxu0 %v100
  %v216 = vpop.f32.mrf.mxu0
  %v217 = vadd.f32 %v66, %v216
  %218 = vmatmul.f32.gmra.mxu0 %v103
  %v219 = vpop.f32.mrf.mxu0
  %v220 = vadd.f32 %v66, %v219
  %221 = vmatmul.f32.gmra.mxu0 %v106
  %v222 = vpop.f32.mrf.mxu0
  %v223 = vadd.f32 %v66, %v222
  %224 = vmatmul.f32.gmra.mxu0 %v109
  %v225 = vpop.f32.mrf.mxu0
  %v226 = vadd.f32 %v66, %v225
  %227 = vmatmul.f32.gmra.mxu0 %v112
  %v228 = vpop.f32.mrf.mxu0
  %v229 = vadd.f32 %v66, %v228
  %230 = vmatmul.f32.gmra.mxu0 %v115
  %v231 = vpop.f32.mrf.mxu0
  %v232 = vadd.f32 %v66, %v231
  %233 = vmatmul.f32.gmra.mxu0 %v118
  %v234 = vpop.f32.mrf.mxu0
  %v235 = vadd.f32 %v66, %v234
  %236 = vmatmul.f32.gmra.mxu0 %v121
  %v237 = vpop.f32.mrf.mxu0
  %v238 = vadd.f32 %v66, %v237
  %239 = vmatmul.f32.gmra.mxu0 %v124
  %v240 = vpop.f32.mrf.mxu0
  %v241 = vadd.f32 %v66, %v240
  %242 = vmatmul.f32.gmra.mxu0 %v127
  %v243 = vpop.f32.mrf.mxu0
  %v244 = vadd.f32 %v66, %v243
  %245 = vmatmul.f32.gmra.mxu0 %v130
  %v246 = vpop.f32.mrf.mxu0
  %v247 = vadd.f32 %v66, %v246
  %248 = vmatmul.f32.gmra.mxu0 %v133
  %v249 = vpop.f32.mrf.mxu0
  %v250 = vadd.f32 %v66, %v249
  %251 = vmatmul.f32.gmra.mxu0 %v136
  %v252 = vpop.f32.mrf.mxu0
  %v253 = vadd.f32 %v66, %v252
  %254 = vmatmul.f32.gmra.mxu0 %v139
  %v255 = vpop.f32.mrf.mxu0
  %v256 = vadd.f32 %v66, %v255
  %257 = vmatmul.f32.gmra.mxu0 %v142
  %v258 = vpop.f32.mrf.mxu0
  %v259 = vadd.f32 %v66, %v258
  %260 = vmatmul.f32.gmra.mxu0 %v145
  %v261 = vpop.f32.mrf.mxu0
  %v262 = vadd.f32 %v66, %v261
  %263 = vmatmul.f32.gmra.mxu0 %v148
  %v264 = vpop.f32.mrf.mxu0
  %v265 = vadd.f32 %v66, %v264
  %266 = vmatmul.f32.gmra.mxu0 %v151
  %v267 = vpop.f32.mrf.mxu0
  %v268 = vadd.f32 %v66, %v267
  %269 = vmatmul.f32.gmra.mxu0 %v154
  %v270 = vpop.f32.mrf.mxu0
  %v271 = vadd.f32 %v66, %v270
  %272 = vmatmul.f32.gmra.mxu0 %v157
  %v273 = vpop.f32.mrf.mxu0
  %v274 = vadd.f32 %v66, %v273
  %275 = vmatmul.f32.gmra.mxu0 %v160
  %v276 = vpop.f32.mrf.mxu0
  %v277 = vadd.f32 %v66, %v276
  %278 = vmatmul.f32.gmra.mxu0 %v163
  %v279 = vpop.f32.mrf.mxu0
  %v280 = vadd.f32 %v66, %v279
  %281 = vdwg.mxu0
  %282 = vst [vmem:[#allocation2] sm:$0xff] %v187
  %283 = vst [vmem:[#allocation2 + $0x8] sm:$0xff] %v190
  %284 = vst [vmem:[#allocation2 + $0x10] sm:$0xff] %v193
  %285 = vst [vmem:[#allocation2 + $0x18] sm:$0xff] %v196
  %286 = vst [vmem:[#allocation2 + $0x20] sm:$0xff] %v199
  %287 = vst [vmem:[#allocation2 + $0x28] sm:$0xff] %v202
  %288 = vst [vmem:[#allocation2 + $0x30] sm:$0xff] %v205
  %289 = vst [vmem:[#allocation2 + $0x38] sm:$0xff] %v208
  %290 = vst [vmem:[#allocation2 + $0x40] sm:$0xff] %v211
  %291 = vst [vmem:[#allocation2 + $0x48] sm:$0xff] %v214
  %292 = vst [vmem:[#allocation2 + $0x50] sm:$0xff] %v217
  %293 = vst [vmem:[#allocation2 + $0x58] sm:$0xff] %v220
  %294 = vst [vmem:[#allocation2 + $0x60] sm:$0xff] %v223
  %295 = vst [vmem:[#allocation2 + $0x68] sm:$0xff] %v226
  %296 = vst [vmem:[#allocation2 + $0x70] sm:$0xff] %v229
  %297 = vst [vmem:[#allocation2 + $0x78] sm:$0xff] %v232
  %298 = vst [vmem:[#allocation2 + $0x80] sm:$0xff] %v235
  %299 = vst [vmem:[#allocation2 + $0x88] sm:$0xff] %v238
  %300 = vst [vmem:[#allocation2 + $0x90] sm:$0xff] %v241
  %301 = vst [vmem:[#allocation2 + $0x98] sm:$0xff] %v244
  %302 = vst [vmem:[#allocation2 + $0xa0] sm:$0xff] %v247
  %303 = vst [vmem:[#allocation2 + $0xa8] sm:$0xff] %v250
  %304 = vst [vmem:[#allocation2 + $0xb0] sm:$0xff] %v253
  %305 = vst [vmem:[#allocation2 + $0xb8] sm:$0xff] %v256
  %306 = vst [vmem:[#allocation2 + $0xc0] sm:$0xff] %v259
  %307 = vst [vmem:[#allocation2 + $0xc8] sm:$0xff] %v262
  %308 = vst [vmem:[#allocation2 + $0xd0] sm:$0xff] %v265
  %309 = vst [vmem:[#allocation2 + $0xd8] sm:$0xff] %v268
  %310 = vst [vmem:[#allocation2 + $0xe0] sm:$0xff] %v271
  %311 = vst [vmem:[#allocation2 + $0xe8] sm:$0xff] %v274
  %312 = vst [vmem:[#allocation2 + $0xf0] sm:$0xff] %v277
  %313 = vst [vmem:[#allocation2 + $0xf8] sm:$0xff] %v280
  %v314 = vld [vmem:[#allocation2] sm:$0xff]
  %v315 = vld [vmem:[#allocation2 + $0x8] sm:$0xff]
  %v316 = vld [vmem:[#allocation2 + $0x10] sm:$0xff]
  %v317 = vld [vmem:[#allocation2 + $0x18] sm:$0xff]
  %vm318 = vcmask 261120
  %v320 = vsel %vm318, 0.0, 0
  %322 = vmatpush.msra.mxu0 0.0
  %323 = vmatpush.msra.mxu0 0.0
  %324 = vmatpush.msra.mxu0 0.0
  %325 = vmatpush.msra.mxu0 0.0
  %326 = vmatpush.msra.mxu0 0.0
  %327 = vmatpush.msra.mxu0 0.0
  %328 = vmatpush.msra.mxu0 0.0
  %329 = vmatpush.msra.mxu0 0.0
  %330 = vmatpush.msra.mxu0 0.0
  %331 = vmatpush.msra.mxu0 0.0
  %332 = vmatpush.msra.mxu0 0.0
  %333 = vmatpush.msra.mxu0 0.0
  %334 = vmatpush.msra.mxu0 %v28
  %335 = vmatpush.msra.mxu0 %v27
  %336 = vmatpush.msra.mxu0 %v26
  %337 = vmatpush.msra.mxu0 %v25
  %338 = vmatmul.f32.gmra.mxu0 %v320
  %v339 = vpop.f32.mrf.mxu0
  %v340 = vadd.f32 0.0, %v339
  %341 = vmatmul.f32.gmra.mxu0 %v320
  %v342 = vpop.f32.mrf.mxu0
  %v343 = vadd.f32 0.0, %v342
  %344 = vmatmul.f32.gmra.mxu0 %v320
  %v345 = vpop.f32.mrf.mxu0
  %v346 = vadd.f32 0.0, %v345
  %347 = vmatmul.f32.gmra.mxu0 %v320
  %v348 = vpop.f32.mrf.mxu0
  %v349 = vadd.f32 0.0, %v348
  %350 = vdwg.mxu0
  %v351 = vadd.f32 %v314, %v340
  %v352 = vadd.f32 %v315, %v343
  %v353 = vadd.f32 %v316, %v346
  %v354 = vadd.f32 %v317, %v349
  %v355 = vxor.u32 %v351, 2147483648
  %v356 = vxor.u32 %v352, 2147483648
  %v357 = vxor.u32 %v353, 2147483648
  %v358 = vxor.u32 %v354, 2147483648
  %v359 = vmul.f32 %v355, 1.442695
  %v360 = vpow.pop %v359
  %v361 = vmul.f32 %v356, 1.442695
  %v362 = vpow.pop %v361
  %v363 = vmul.f32 %v357, 1.442695
  %v364 = vpow.pop %v363
  %v365 = vmul.f32 %v358, 1.442695
  %v366 = vpow.pop %v365
  %v367 = vadd.f32 %v360, 1.0
  %v368 = vadd.f32 %v362, 1.0
  %v369 = vadd.f32 %v364, 1.0
  %v370 = vadd.f32 %v366, 1.0
  %v371 = vrcp.pop %v367
  %v372 = vmul.f32 %v367, %v371
  %v373 = vsub.f32 1.0, %v372
  %v374 = vmul.f32 %v371, %v373
  %v375 = vadd.f32 %v371, %v374
  %vm376 = vweird.f32 %v367
  %vm377 = vweird.f32 %v371
  %vm378 = vmor %vm376, %vm377
  %v379 = vsel %vm378, %v371, %v375
  %v380 = vand.u32 2147483647, %v367
  %vm381 = vcmp.eq.f32.partialorder %v380, 8.507059e+37
  %v382 = vand.u32 %v367, 2147483648
  %v383 = vor.u32 1.1754944e-38, %v382
  %v384 = vsel %vm381, %v383, %v379
  %v385 = vmul.f32 1.0, %v384
  %v386 = vrcp.pop %v368
  %v387 = vmul.f32 %v368, %v386
  %v388 = vsub.f32 1.0, %v387
  %v389 = vmul.f32 %v386, %v388
  %v390 = vadd.f32 %v386, %v389
  %vm391 = vweird.f32 %v368
  %vm392 = vweird.f32 %v386
  %vm393 = vmor %vm391, %vm392
  %v394 = vsel %vm393, %v386, %v390
  %v395 = vand.u32 2147483647, %v368
  %vm396 = vcmp.eq.f32.partialorder %v395, 8.507059e+37
  %v397 = vand.u32 %v368, 2147483648
  %v398 = vor.u32 1.1754944e-38, %v397
  %v399 = vsel %vm396, %v398, %v394
  %v400 = vmul.f32 1.0, %v399
  %v401 = vrcp.pop %v369
  %v402 = vmul.f32 %v369, %v401
  %v403 = vsub.f32 1.0, %v402
  %v404 = vmul.f32 %v401, %v403
  %v405 = vadd.f32 %v401, %v404
  %vm406 = vweird.f32 %v369
  %vm407 = vweird.f32 %v401
  %vm408 = vmor %vm406, %vm407
  %v409 = vsel %vm408, %v401, %v405
  %v410 = vand.u32 2147483647, %v369
  %vm411 = vcmp.eq.f32.partialorder %v410, 8.507059e+37
  %v412 = vand.u32 %v369, 2147483648
  %v413 = vor.u32 1.1754944e-38, %v412
  %v414 = vsel %vm411, %v413, %v409
  %v415 = vmul.f32 1.0, %v414
  %v416 = vrcp.pop %v370
  %v417 = vmul.f32 %v370, %v416
  %v418 = vsub.f32 1.0, %v417
  %v419 = vmul.f32 %v416, %v418
  %v420 = vadd.f32 %v416, %v419
  %vm421 = vweird.f32 %v370
  %vm422 = vweird.f32 %v416
  %vm423 = vmor %vm421, %vm422
  %v424 = vsel %vm423, %v416, %v420
  %v425 = vand.u32 2147483647, %v370
  %vm426 = vcmp.eq.f32.partialorder %v425, 8.507059e+37
  %v427 = vand.u32 %v370, 2147483648
  %v428 = vor.u32 1.1754944e-38, %v427
  %v429 = vsel %vm426, %v428, %v424
  %v430 = vmul.f32 1.0, %v429
  %v431 = vtanh.pop %v351
  %v432 = vtanh.pop %v352
  %v433 = vtanh.pop %v353
  %v434 = vtanh.pop %v354
  %v435 = vmul.f32 %v385, 0.0
  %v436 = vmul.f32 %v400, 0.0
  %v437 = vmul.f32 %v415, 0.0
  %v438 = vmul.f32 %v430, 0.0
  %443 = vrot.lane.b32.xlu0 %v431, 64
  %v444 = vpop.permute.xlu0 %443
  %445 = vrot.lane.b32.xlu0 %v432, 64
  %v446 = vpop.permute.xlu0 %445
  %447 = vrot.lane.b32.xlu0 %v433, 64
  %v448 = vpop.permute.xlu0 %447
  %449 = vrot.lane.b32.xlu0 %v434, 64
  %v450 = vpop.permute.xlu0 %449
  %v455 = vmul.f32 %v385, %v444
  %v456 = vmul.f32 %v400, %v446
  %v457 = vmul.f32 %v415, %v448
  %v458 = vmul.f32 %v430, %v450
  %463 = vrot.lane.b32.xlu0 %v455, 32
  %v464 = vpop.permute.xlu0 %463
  %465 = vrot.lane.b32.xlu0 %v456, 32
  %v466 = vpop.permute.xlu0 %465
  %467 = vrot.lane.b32.xlu0 %v457, 32
  %v468 = vpop.permute.xlu0 %467
  %469 = vrot.lane.b32.xlu0 %v458, 32
  %v470 = vpop.permute.xlu0 %469
  %v475 = vadd.f32 %v435, %v464
  %v476 = vadd.f32 %v436, %v466
  %v477 = vadd.f32 %v437, %v468
  %v478 = vadd.f32 %v438, %v470
  %v479 = vtanh.pop %v475
  %v480 = vtanh.pop %v476
  %v481 = vtanh.pop %v477
  %v482 = vtanh.pop %v478
  %487 = vrot.lane.b32.xlu0 %v479, 64
  %v488 = vpop.permute.xlu0 %487
  %489 = vrot.lane.b32.xlu0 %v480, 64
  %v490 = vpop.permute.xlu0 %489
  %491 = vrot.lane.b32.xlu0 %v481, 64
  %v492 = vpop.permute.xlu0 %491
  %493 = vrot.lane.b32.xlu0 %v482, 64
  %v494 = vpop.permute.xlu0 %493
  %v499 = vmul.f32 %v385, %v488
  %v500 = vmul.f32 %v400, %v490
  %v501 = vmul.f32 %v415, %v492
  %v502 = vmul.f32 %v430, %v494
  %v503 = vld [vmem:[#allocation2 + $0x20] sm:$0xff]
  %v504 = vld [vmem:[#allocation2 + $0x28] sm:$0xff]
  %v505 = vld [vmem:[#allocation2 + $0x30] sm:$0xff]
  %v506 = vld [vmem:[#allocation2 + $0x38] sm:$0xff]
  %511 = vrot.lane.b32.xlu0 %v499, 32
  %v512 = vpop.permute.xlu0 %511
  %513 = vrot.lane.b32.xlu0 %v500, 32
  %v514 = vpop.permute.xlu0 %513
  %515 = vrot.lane.b32.xlu0 %v501, 32
  %v516 = vpop.permute.xlu0 %515
  %517 = vrot.lane.b32.xlu0 %v502, 32
  %v518 = vpop.permute.xlu0 %517
  %v519 = vsel %vm318, %v512, 0
  %v521 = vsel %vm318, %v514, 0
  %v523 = vsel %vm318, %v516, 0
  %v525 = vsel %vm318, %v518, 0
  %527 = vmatpush.msra.mxu0 0.0
  %528 = vmatpush.msra.mxu0 0.0
  %529 = vmatpush.msra.mxu0 0.0
  %530 = vmatpush.msra.mxu0 0.0
  %531 = vmatpush.msra.mxu0 0.0
  %532 = vmatpush.msra.mxu0 0.0
  %533 = vmatpush.msra.mxu0 0.0
  %534 = vmatpush.msra.mxu0 0.0
  %535 = vmatpush.msra.mxu0 0.0
  %536 = vmatpush.msra.mxu0 0.0
  %537 = vmatpush.msra.mxu0 0.0
  %538 = vmatpush.msra.mxu0 0.0
  %539 = vmatpush.msra.mxu0 %v28
  %540 = vmatpush.msra.mxu0 %v27
  %541 = vmatpush.msra.mxu0 %v26
  %542 = vmatpush.msra.mxu0 %v25
  %543 = vmatmul.f32.gmra.mxu0 %v519
  %v544 = vpop.f32.mrf.mxu0
  %v545 = vadd.f32 0.0, %v544
  %546 = vmatmul.f32.gmra.mxu0 %v521
  %v547 = vpop.f32.mrf.mxu0
  %v548 = vadd.f32 0.0, %v547
  %549 = vmatmul.f32.gmra.mxu0 %v523
  %v550 = vpop.f32.mrf.mxu0
  %v551 = vadd.f32 0.0, %v550
  %552 = vmatmul.f32.gmra.mxu0 %v525
  %v553 = vpop.f32.mrf.mxu0
  %v554 = vadd.f32 0.0, %v553
  %555 = vdwg.mxu0
  %v556 = vadd.f32 %v503, %v545
  %v557 = vadd.f32 %v504, %v548
  %v558 = vadd.f32 %v505, %v551
  %v559 = vadd.f32 %v506, %v554
  %v560 = vxor.u32 %v556, 2147483648
  %v561 = vxor.u32 %v557, 2147483648
  %v562 = vxor.u32 %v558, 2147483648
  %v563 = vxor.u32 %v559, 2147483648
  %v564 = vmul.f32 %v560, 1.442695
  %v565 = vpow.pop %v564
  %v566 = vmul.f32 %v561, 1.442695
  %v567 = vpow.pop %v566
  %v568 = vmul.f32 %v562, 1.442695
  %v569 = vpow.pop %v568
  %v570 = vmul.f32 %v563, 1.442695
  %v571 = vpow.pop %v570
  %v572 = vadd.f32 %v565, 1.0
  %v573 = vadd.f32 %v567, 1.0
  %v574 = vadd.f32 %v569, 1.0
  %v575 = vadd.f32 %v571, 1.0
  %v576 = vrcp.pop %v572
  %v577 = vmul.f32 %v572, %v576
  %v578 = vsub.f32 1.0, %v577
  %v579 = vmul.f32 %v576, %v578
  %v580 = vadd.f32 %v576, %v579
  %vm581 = vweird.f32 %v572
  %vm582 = vweird.f32 %v576
  %vm583 = vmor %vm581, %vm582
  %v584 = vsel %vm583, %v576, %v580
  %v585 = vand.u32 2147483647, %v572
  %vm586 = vcmp.eq.f32.partialorder %v585, 8.507059e+37
  %v587 = vand.u32 %v572, 2147483648
  %v588 = vor.u32 1.1754944e-38, %v587
  %v589 = vsel %vm586, %v588, %v584
  %v590 = vmul.f32 1.0, %v589
  %v591 = vrcp.pop %v573
  %v592 = vmul.f32 %v573, %v591
  %v593 = vsub.f32 1.0, %v592
  %v594 = vmul.f32 %v591, %v593
  %v595 = vadd.f32 %v591, %v594
  %vm596 = vweird.f32 %v573
  %vm597 = vweird.f32 %v591
  %vm598 = vmor %vm596, %vm597
  %v599 = vsel %vm598, %v591, %v595
  %v600 = vand.u32 2147483647, %v573
  %vm601 = vcmp.eq.f32.partialorder %v600, 8.507059e+37
  %v602 = vand.u32 %v573, 2147483648
  %v603 = vor.u32 1.1754944e-38, %v602
  %v604 = vsel %vm601, %v603, %v599
  %v605 = vmul.f32 1.0, %v604
  %v606 = vrcp.pop %v574
  %v607 = vmul.f32 %v574, %v606
  %v608 = vsub.f32 1.0, %v607
  %v609 = vmul.f32 %v606, %v608
  %v610 = vadd.f32 %v606, %v609
  %vm611 = vweird.f32 %v574
  %vm612 = vweird.f32 %v606
  %vm613 = vmor %vm611, %vm612
  %v614 = vsel %vm613, %v606, %v610
  %v615 = vand.u32 2147483647, %v574
  %vm616 = vcmp.eq.f32.partialorder %v615, 8.507059e+37
  %v617 = vand.u32 %v574, 2147483648
  %v618 = vor.u32 1.1754944e-38, %v617
  %v619 = vsel %vm616, %v618, %v614
  %v620 = vmul.f32 1.0, %v619
  %v621 = vrcp.pop %v575
  %v622 = vmul.f32 %v575, %v621
  %v623 = vsub.f32 1.0, %v622
  %v624 = vmul.f32 %v621, %v623
  %v625 = vadd.f32 %v621, %v624
  %vm626 = vweird.f32 %v575
  %vm627 = vweird.f32 %v621
  %vm628 = vmor %vm626, %vm627
  %v629 = vsel %vm628, %v621, %v625
  %v630 = vand.u32 2147483647, %v575
  %vm631 = vcmp.eq.f32.partialorder %v630, 8.507059e+37
  %v632 = vand.u32 %v575, 2147483648
  %v633 = vor.u32 1.1754944e-38, %v632
  %v634 = vsel %vm631, %v633, %v629
  %v635 = vmul.f32 1.0, %v634
  %v636 = vtanh.pop %v556
  %v637 = vtanh.pop %v557
  %v638 = vtanh.pop %v558
  %v639 = vtanh.pop %v559
  %v640 = vmul.f32 %v590, %v475
  %v641 = vmul.f32 %v605, %v476
  %v642 = vmul.f32 %v620, %v477
  %v643 = vmul.f32 %v635, %v478
  %648 = vrot.lane.b32.xlu0 %v636, 64
  %v649 = vpop.permute.xlu0 %648
  %650 = vrot.lane.b32.xlu0 %v637, 64
  %v651 = vpop.permute.xlu0 %650
  %652 = vrot.lane.b32.xlu0 %v638, 64
  %v653 = vpop.permute.xlu0 %652
  %654 = vrot.lane.b32.xlu0 %v639, 64
  %v655 = vpop.permute.xlu0 %654
  %v660 = vmul.f32 %v590, %v649
  %v661 = vmul.f32 %v605, %v651
  %v662 = vmul.f32 %v620, %v653
  %v663 = vmul.f32 %v635, %v655
  %668 = vrot.lane.b32.xlu0 %v660, 32
  %v669 = vpop.permute.xlu0 %668
  %670 = vrot.lane.b32.xlu0 %v661, 32
  %v671 = vpop.permute.xlu0 %670
  %672 = vrot.lane.b32.xlu0 %v662, 32
  %v673 = vpop.permute.xlu0 %672
  %674 = vrot.lane.b32.xlu0 %v663, 32
  %v675 = vpop.permute.xlu0 %674
  %v680 = vadd.f32 %v640, %v669
  %v681 = vadd.f32 %v641, %v671
  %v682 = vadd.f32 %v642, %v673
  %v683 = vadd.f32 %v643, %v675
  %v684 = vtanh.pop %v680
  %v685 = vtanh.pop %v681
  %v686 = vtanh.pop %v682
  %v687 = vtanh.pop %v683
  %692 = vrot.lane.b32.xlu0 %v684, 64
  %v693 = vpop.permute.xlu0 %692
  %694 = vrot.lane.b32.xlu0 %v685, 64
  %v695 = vpop.permute.xlu0 %694
  %696 = vrot.lane.b32.xlu0 %v686, 64
  %v697 = vpop.permute.xlu0 %696
  %698 = vrot.lane.b32.xlu0 %v687, 64
  %v699 = vpop.permute.xlu0 %698
  %v704 = vmul.f32 %v590, %v693
  %v705 = vmul.f32 %v605, %v695
  %v706 = vmul.f32 %v620, %v697
  %v707 = vmul.f32 %v635, %v699
  %v708 = vld [vmem:[#allocation2 + $0x40] sm:$0xff]
  %v709 = vld [vmem:[#allocation2 + $0x48] sm:$0xff]
  %v710 = vld [vmem:[#allocation2 + $0x50] sm:$0xff]
  %v711 = vld [vmem:[#allocation2 + $0x58] sm:$0xff]
  %716 = vrot.lane.b32.xlu0 %v704, 32
  %v717 = vpop.permute.xlu0 %716
  %718 = vrot.lane.b32.xlu0 %v705, 32
  %v719 = vpop.permute.xlu0 %718
  %720 = vrot.lane.b32.xlu0 %v706, 32
  %v721 = vpop.permute.xlu0 %720
  %722 = vrot.lane.b32.xlu0 %v707, 32
  %v723 = vpop.permute.xlu0 %722
  %v724 = vsel %vm318, %v717, 0
  %v726 = vsel %vm318, %v719, 0
  %v728 = vsel %vm318, %v721, 0
  %v730 = vsel %vm318, %v723, 0
  %732 = vmatpush.msra.mxu0 0.0
  %733 = vmatpush.msra.mxu0 0.0
  %734 = vmatpush.msra.mxu0 0.0
  %735 = vmatpush.msra.mxu0 0.0
  %736 = vmatpush.msra.mxu0 0.0
  %737 = vmatpush.msra.mxu0 0.0
  %738 = vmatpush.msra.mxu0 0.0
  %739 = vmatpush.msra.mxu0 0.0
  %740 = vmatpush.msra.mxu0 0.0
  %741 = vmatpush.msra.mxu0 0.0
  %742 = vmatpush.msra.mxu0 0.0
  %743 = vmatpush.msra.mxu0 0.0
  %744 = vmatpush.msra.mxu0 %v28
  %745 = vmatpush.msra.mxu0 %v27
  %746 = vmatpush.msra.mxu0 %v26
  %747 = vmatpush.msra.mxu0 %v25
  %748 = vmatmul.f32.gmra.mxu0 %v724
  %v749 = vpop.f32.mrf.mxu0
  %v750 = vadd.f32 0.0, %v749
  %751 = vmatmul.f32.gmra.mxu0 %v726
  %v752 = vpop.f32.mrf.mxu0
  %v753 = vadd.f32 0.0, %v752
  %754 = vmatmul.f32.gmra.mxu0 %v728
  %v755 = vpop.f32.mrf.mxu0
  %v756 = vadd.f32 0.0, %v755
  %757 = vmatmul.f32.gmra.mxu0 %v730
  %v758 = vpop.f32.mrf.mxu0
  %v759 = vadd.f32 0.0, %v758
  %760 = vdwg.mxu0
  %v761 = vadd.f32 %v708, %v750
  %v762 = vadd.f32 %v709, %v753
  %v763 = vadd.f32 %v710, %v756
  %v764 = vadd.f32 %v711, %v759
  %v765 = vxor.u32 %v761, 2147483648
  %v766 = vxor.u32 %v762, 2147483648
  %v767 = vxor.u32 %v763, 2147483648
  %v768 = vxor.u32 %v764, 2147483648
  %v769 = vmul.f32 %v765, 1.442695
  %v770 = vpow.pop %v769
  %v771 = vmul.f32 %v766, 1.442695
  %v772 = vpow.pop %v771
  %v773 = vmul.f32 %v767, 1.442695
  %v774 = vpow.pop %v773
  %v775 = vmul.f32 %v768, 1.442695
  %v776 = vpow.pop %v775
  %v777 = vadd.f32 %v770, 1.0
  %v778 = vadd.f32 %v772, 1.0
  %v779 = vadd.f32 %v774, 1.0
  %v780 = vadd.f32 %v776, 1.0
  %v781 = vrcp.pop %v777
  %v782 = vmul.f32 %v777, %v781
  %v783 = vsub.f32 1.0, %v782
  %v784 = vmul.f32 %v781, %v783
  %v785 = vadd.f32 %v781, %v784
  %vm786 = vweird.f32 %v777
  %vm787 = vweird.f32 %v781
  %vm788 = vmor %vm786, %vm787
  %v789 = vsel %vm788, %v781, %v785
  %v790 = vand.u32 2147483647, %v777
  %vm791 = vcmp.eq.f32.partialorder %v790, 8.507059e+37
  %v792 = vand.u32 %v777, 2147483648
  %v793 = vor.u32 1.1754944e-38, %v792
  %v794 = vsel %vm791, %v793, %v789
  %v795 = vmul.f32 1.0, %v794
  %v796 = vrcp.pop %v778
  %v797 = vmul.f32 %v778, %v796
  %v798 = vsub.f32 1.0, %v797
  %v799 = vmul.f32 %v796, %v798
  %v800 = vadd.f32 %v796, %v799
  %vm801 = vweird.f32 %v778
  %vm802 = vweird.f32 %v796
  %vm803 = vmor %vm801, %vm802
  %v804 = vsel %vm803, %v796, %v800
  %v805 = vand.u32 2147483647, %v778
  %vm806 = vcmp.eq.f32.partialorder %v805, 8.507059e+37
  %v807 = vand.u32 %v778, 2147483648
  %v808 = vor.u32 1.1754944e-38, %v807
  %v809 = vsel %vm806, %v808, %v804
  %v810 = vmul.f32 1.0, %v809
  %v811 = vrcp.pop %v779
  %v812 = vmul.f32 %v779, %v811
  %v813 = vsub.f32 1.0, %v812
  %v814 = vmul.f32 %v811, %v813
  %v815 = vadd.f32 %v811, %v814
  %vm816 = vweird.f32 %v779
  %vm817 = vweird.f32 %v811
  %vm818 = vmor %vm816, %vm817
  %v819 = vsel %vm818, %v811, %v815
  %v820 = vand.u32 2147483647, %v779
  %vm821 = vcmp.eq.f32.partialorder %v820, 8.507059e+37
  %v822 = vand.u32 %v779, 2147483648
  %v823 = vor.u32 1.1754944e-38, %v822
  %v824 = vsel %vm821, %v823, %v819
  %v825 = vmul.f32 1.0, %v824
  %v826 = vrcp.pop %v780
  %v827 = vmul.f32 %v780, %v826
  %v828 = vsub.f32 1.0, %v827
  %v829 = vmul.f32 %v826, %v828
  %v830 = vadd.f32 %v826, %v829
  %vm831 = vweird.f32 %v780
  %vm832 = vweird.f32 %v826
  %vm833 = vmor %vm831, %vm832
  %v834 = vsel %vm833, %v826, %v830
  %v835 = vand.u32 2147483647, %v780
  %vm836 = vcmp.eq.f32.partialorder %v835, 8.507059e+37
  %v837 = vand.u32 %v780, 2147483648
  %v838 = vor.u32 1.1754944e-38, %v837
  %v839 = vsel %vm836, %v838, %v834
  %v840 = vmul.f32 1.0, %v839
  %v841 = vtanh.pop %v761
  %v842 = vtanh.pop %v762
  %v843 = vtanh.pop %v763
  %v844 = vtanh.pop %v764
  %v845 = vmul.f32 %v795, %v680
  %v846 = vmul.f32 %v810, %v681
  %v847 = vmul.f32 %v825, %v682
  %v848 = vmul.f32 %v840, %v683
  %853 = vrot.lane.b32.xlu0 %v841, 64
  %v854 = vpop.permute.xlu0 %853
  %855 = vrot.lane.b32.xlu0 %v842, 64
  %v856 = vpop.permute.xlu0 %855
  %857 = vrot.lane.b32.xlu0 %v843, 64
  %v858 = vpop.permute.xlu0 %857
  %859 = vrot.lane.b32.xlu0 %v844, 64
  %v860 = vpop.permute.xlu0 %859
  %v865 = vmul.f32 %v795, %v854
  %v866 = vmul.f32 %v810, %v856
  %v867 = vmul.f32 %v825, %v858
  %v868 = vmul.f32 %v840, %v860
  %873 = vrot.lane.b32.xlu0 %v865, 32
  %v874 = vpop.permute.xlu0 %873
  %875 = vrot.lane.b32.xlu0 %v866, 32
  %v876 = vpop.permute.xlu0 %875
  %877 = vrot.lane.b32.xlu0 %v867, 32
  %v878 = vpop.permute.xlu0 %877
  %879 = vrot.lane.b32.xlu0 %v868, 32
  %v880 = vpop.permute.xlu0 %879
  %v885 = vadd.f32 %v845, %v874
  %v886 = vadd.f32 %v846, %v876
  %v887 = vadd.f32 %v847, %v878
  %v888 = vadd.f32 %v848, %v880
  %v889 = vtanh.pop %v885
  %v890 = vtanh.pop %v886
  %v891 = vtanh.pop %v887
  %v892 = vtanh.pop %v888
  %897 = vrot.lane.b32.xlu0 %v889, 64
  %v898 = vpop.permute.xlu0 %897
  %899 = vrot.lane.b32.xlu0 %v890, 64
  %v900 = vpop.permute.xlu0 %899
  %901 = vrot.lane.b32.xlu0 %v891, 64
  %v902 = vpop.permute.xlu0 %901
  %903 = vrot.lane.b32.xlu0 %v892, 64
  %v904 = vpop.permute.xlu0 %903
  %v909 = vmul.f32 %v795, %v898
  %v910 = vmul.f32 %v810, %v900
  %v911 = vmul.f32 %v825, %v902
  %v912 = vmul.f32 %v840, %v904
  %v913 = vld [vmem:[#allocation2 + $0x60] sm:$0xff]
  %v914 = vld [vmem:[#allocation2 + $0x68] sm:$0xff]
  %v915 = vld [vmem:[#allocation2 + $0x70] sm:$0xff]
  %v916 = vld [vmem:[#allocation2 + $0x78] sm:$0xff]
  %921 = vrot.lane.b32.xlu0 %v909, 32
  %v922 = vpop.permute.xlu0 %921
  %923 = vrot.lane.b32.xlu0 %v910, 32
  %v924 = vpop.permute.xlu0 %923
  %925 = vrot.lane.b32.xlu0 %v911, 32
  %v926 = vpop.permute.xlu0 %925
  %927 = vrot.lane.b32.xlu0 %v912, 32
  %v928 = vpop.permute.xlu0 %927
  %v929 = vsel %vm318, %v922, 0
  %v931 = vsel %vm318, %v924, 0
  %v933 = vsel %vm318, %v926, 0
  %v935 = vsel %vm318, %v928, 0
  %937 = vmatpush.msra.mxu0 0.0
  %938 = vmatpush.msra.mxu0 0.0
  %939 = vmatpush.msra.mxu0 0.0
  %940 = vmatpush.msra.mxu0 0.0
  %941 = vmatpush.msra.mxu0 0.0
  %942 = vmatpush.msra.mxu0 0.0
  %943 = vmatpush.msra.mxu0 0.0
  %944 = vmatpush.msra.mxu0 0.0
  %945 = vmatpush.msra.mxu0 0.0
  %946 = vmatpush.msra.mxu0 0.0
  %947 = vmatpush.msra.mxu0 0.0
  %948 = vmatpush.msra.mxu0 0.0
  %949 = vmatpush.msra.mxu0 %v28
  %950 = vmatpush.msra.mxu0 %v27
  %951 = vmatpush.msra.mxu0 %v26
  %952 = vmatpush.msra.mxu0 %v25
  %953 = vmatmul.f32.gmra.mxu0 %v929
  %v954 = vpop.f32.mrf.mxu0
  %v955 = vadd.f32 0.0, %v954
  %956 = vmatmul.f32.gmra.mxu0 %v931
  %v957 = vpop.f32.mrf.mxu0
  %v958 = vadd.f32 0.0, %v957
  %959 = vmatmul.f32.gmra.mxu0 %v933
  %v960 = vpop.f32.mrf.mxu0
  %v961 = vadd.f32 0.0, %v960
  %962 = vmatmul.f32.gmra.mxu0 %v935
  %v963 = vpop.f32.mrf.mxu0
  %v964 = vadd.f32 0.0, %v963
  %965 = vdwg.mxu0
  %v966 = vadd.f32 %v913, %v955
  %v967 = vadd.f32 %v914, %v958
  %v968 = vadd.f32 %v915, %v961
  %v969 = vadd.f32 %v916, %v964
  %v970 = vxor.u32 %v966, 2147483648
  %v971 = vxor.u32 %v967, 2147483648
  %v972 = vxor.u32 %v968, 2147483648
  %v973 = vxor.u32 %v969, 2147483648
  %v974 = vmul.f32 %v970, 1.442695
  %v975 = vpow.pop %v974
  %v976 = vmul.f32 %v971, 1.442695
  %v977 = vpow.pop %v976
  %v978 = vmul.f32 %v972, 1.442695
  %v979 = vpow.pop %v978
  %v980 = vmul.f32 %v973, 1.442695
  %v981 = vpow.pop %v980
  %v982 = vadd.f32 %v975, 1.0
  %v983 = vadd.f32 %v977, 1.0
  %v984 = vadd.f32 %v979, 1.0
  %v985 = vadd.f32 %v981, 1.0
  %v986 = vrcp.pop %v982
  %v987 = vmul.f32 %v982, %v986
  %v988 = vsub.f32 1.0, %v987
  %v989 = vmul.f32 %v986, %v988
  %v990 = vadd.f32 %v986, %v989
  %vm991 = vweird.f32 %v982
  %vm992 = vweird.f32 %v986
  %vm993 = vmor %vm991, %vm992
  %v994 = vsel %vm993, %v986, %v990
  %v995 = vand.u32 2147483647, %v982
  %vm996 = vcmp.eq.f32.partialorder %v995, 8.507059e+37
  %v997 = vand.u32 %v982, 2147483648
  %v998 = vor.u32 1.1754944e-38, %v997
  %v999 = vsel %vm996, %v998, %v994
  %v1000 = vmul.f32 1.0, %v999
  %v1001 = vrcp.pop %v983
  %v1002 = vmul.f32 %v983, %v1001
  %v1003 = vsub.f32 1.0, %v1002
  %v1004 = vmul.f32 %v1001, %v1003
  %v1005 = vadd.f32 %v1001, %v1004
  %vm1006 = vweird.f32 %v983
  %vm1007 = vweird.f32 %v1001
  %vm1008 = vmor %vm1006, %vm1007
  %v1009 = vsel %vm1008, %v1001, %v1005
  %v1010 = vand.u32 2147483647, %v983
  %vm1011 = vcmp.eq.f32.partialorder %v1010, 8.507059e+37
  %v1012 = vand.u32 %v983, 2147483648
  %v1013 = vor.u32 1.1754944e-38, %v1012
  %v1014 = vsel %vm1011, %v1013, %v1009
  %v1015 = vmul.f32 1.0, %v1014
  %v1016 = vrcp.pop %v984
  %v1017 = vmul.f32 %v984, %v1016
  %v1018 = vsub.f32 1.0, %v1017
  %v1019 = vmul.f32 %v1016, %v1018
  %v1020 = vadd.f32 %v1016, %v1019
  %vm1021 = vweird.f32 %v984
  %vm1022 = vweird.f32 %v1016
  %vm1023 = vmor %vm1021, %vm1022
  %v1024 = vsel %vm1023, %v1016, %v1020
  %v1025 = vand.u32 2147483647, %v984
  %vm1026 = vcmp.eq.f32.partialorder %v1025, 8.507059e+37
  %v1027 = vand.u32 %v984, 2147483648
  %v1028 = vor.u32 1.1754944e-38, %v1027
  %v1029 = vsel %vm1026, %v1028, %v1024
  %v1030 = vmul.f32 1.0, %v1029
  %v1031 = vrcp.pop %v985
  %v1032 = vmul.f32 %v985, %v1031
  %v1033 = vsub.f32 1.0, %v1032
  %v1034 = vmul.f32 %v1031, %v1033
  %v1035 = vadd.f32 %v1031, %v1034
  %vm1036 = vweird.f32 %v985
  %vm1037 = vweird.f32 %v1031
  %vm1038 = vmor %vm1036, %vm1037
  %v1039 = vsel %vm1038, %v1031, %v1035
  %v1040 = vand.u32 2147483647, %v985
  %vm1041 = vcmp.eq.f32.partialorder %v1040, 8.507059e+37
  %v1042 = vand.u32 %v985, 2147483648
  %v1043 = vor.u32 1.1754944e-38, %v1042
  %v1044 = vsel %vm1041, %v1043, %v1039
  %v1045 = vmul.f32 1.0, %v1044
  %v1046 = vtanh.pop %v966
  %v1047 = vtanh.pop %v967
  %v1048 = vtanh.pop %v968
  %v1049 = vtanh.pop %v969
  %v1050 = vmul.f32 %v1000, %v885
  %v1051 = vmul.f32 %v1015, %v886
  %v1052 = vmul.f32 %v1030, %v887
  %v1053 = vmul.f32 %v1045, %v888
  %1058 = vrot.lane.b32.xlu0 %v1046, 64
  %v1059 = vpop.permute.xlu0 %1058
  %1060 = vrot.lane.b32.xlu0 %v1047, 64
  %v1061 = vpop.permute.xlu0 %1060
  %1062 = vrot.lane.b32.xlu0 %v1048, 64
  %v1063 = vpop.permute.xlu0 %1062
  %1064 = vrot.lane.b32.xlu0 %v1049, 64
  %v1065 = vpop.permute.xlu0 %1064
  %v1070 = vmul.f32 %v1000, %v1059
  %v1071 = vmul.f32 %v1015, %v1061
  %v1072 = vmul.f32 %v1030, %v1063
  %v1073 = vmul.f32 %v1045, %v1065
  %1078 = vrot.lane.b32.xlu0 %v1070, 32
  %v1079 = vpop.permute.xlu0 %1078
  %1080 = vrot.lane.b32.xlu0 %v1071, 32
  %v1081 = vpop.permute.xlu0 %1080
  %1082 = vrot.lane.b32.xlu0 %v1072, 32
  %v1083 = vpop.permute.xlu0 %1082
  %1084 = vrot.lane.b32.xlu0 %v1073, 32
  %v1085 = vpop.permute.xlu0 %1084
  %v1090 = vadd.f32 %v1050, %v1079
  %v1091 = vadd.f32 %v1051, %v1081
  %v1092 = vadd.f32 %v1052, %v1083
  %v1093 = vadd.f32 %v1053, %v1085
  %v1094 = vtanh.pop %v1090
  %v1095 = vtanh.pop %v1091
  %v1096 = vtanh.pop %v1092
  %v1097 = vtanh.pop %v1093
  %1102 = vrot.lane.b32.xlu0 %v1094, 64
  %v1103 = vpop.permute.xlu0 %1102
  %1104 = vrot.lane.b32.xlu0 %v1095, 64
  %v1105 = vpop.permute.xlu0 %1104
  %1106 = vrot.lane.b32.xlu0 %v1096, 64
  %v1107 = vpop.permute.xlu0 %1106
  %1108 = vrot.lane.b32.xlu0 %v1097, 64
  %v1109 = vpop.permute.xlu0 %1108
  %v1114 = vmul.f32 %v1000, %v1103
  %v1115 = vmul.f32 %v1015, %v1105
  %v1116 = vmul.f32 %v1030, %v1107
  %v1117 = vmul.f32 %v1045, %v1109
  %v1118 = vld [vmem:[#allocation2 + $0x80] sm:$0xff]
  %v1119 = vld [vmem:[#allocation2 + $0x88] sm:$0xff]
  %v1120 = vld [vmem:[#allocation2 + $0x90] sm:$0xff]
  %v1121 = vld [vmem:[#allocation2 + $0x98] sm:$0xff]
  %1126 = vrot.lane.b32.xlu0 %v1114, 32
  %v1127 = vpop.permute.xlu0 %1126
  %1128 = vrot.lane.b32.xlu0 %v1115, 32
  %v1129 = vpop.permute.xlu0 %1128
  %1130 = vrot.lane.b32.xlu0 %v1116, 32
  %v1131 = vpop.permute.xlu0 %1130
  %1132 = vrot.lane.b32.xlu0 %v1117, 32
  %v1133 = vpop.permute.xlu0 %1132
  %v1134 = vsel %vm318, %v1127, 0
  %v1136 = vsel %vm318, %v1129, 0
  %v1138 = vsel %vm318, %v1131, 0
  %v1140 = vsel %vm318, %v1133, 0
  %1142 = vmatpush.msra.mxu0 0.0
  %1143 = vmatpush.msra.mxu0 0.0
  %1144 = vmatpush.msra.mxu0 0.0
  %1145 = vmatpush.msra.mxu0 0.0
  %1146 = vmatpush.msra.mxu0 0.0
  %1147 = vmatpush.msra.mxu0 0.0
  %1148 = vmatpush.msra.mxu0 0.0
  %1149 = vmatpush.msra.mxu0 0.0
  %1150 = vmatpush.msra.mxu0 0.0
  %1151 = vmatpush.msra.mxu0 0.0
  %1152 = vmatpush.msra.mxu0 0.0
  %1153 = vmatpush.msra.mxu0 0.0
  %1154 = vmatpush.msra.mxu0 %v28
  %1155 = vmatpush.msra.mxu0 %v27
  %1156 = vmatpush.msra.mxu0 %v26
  %1157 = vmatpush.msra.mxu0 %v25
  %1158 = vmatmul.f32.gmra.mxu0 %v1134
  %v1159 = vpop.f32.mrf.mxu0
  %v1160 = vadd.f32 0.0, %v1159
  %1161 = vmatmul.f32.gmra.mxu0 %v1136
  %v1162 = vpop.f32.mrf.mxu0
  %v1163 = vadd.f32 0.0, %v1162
  %1164 = vmatmul.f32.gmra.mxu0 %v1138
  %v1165 = vpop.f32.mrf.mxu0
  %v1166 = vadd.f32 0.0, %v1165
  %1167 = vmatmul.f32.gmra.mxu0 %v1140
  %v1168 = vpop.f32.mrf.mxu0
  %v1169 = vadd.f32 0.0, %v1168
  %1170 = vdwg.mxu0
  %v1171 = vadd.f32 %v1118, %v1160
  %v1172 = vadd.f32 %v1119, %v1163
  %v1173 = vadd.f32 %v1120, %v1166
  %v1174 = vadd.f32 %v1121, %v1169
  %v1175 = vxor.u32 %v1171, 2147483648
  %v1176 = vxor.u32 %v1172, 2147483648
  %v1177 = vxor.u32 %v1173, 2147483648
  %v1178 = vxor.u32 %v1174, 2147483648
  %v1179 = vmul.f32 %v1175, 1.442695
  %v1180 = vpow.pop %v1179
  %v1181 = vmul.f32 %v1176, 1.442695
  %v1182 = vpow.pop %v1181
  %v1183 = vmul.f32 %v1177, 1.442695
  %v1184 = vpow.pop %v1183
  %v1185 = vmul.f32 %v1178, 1.442695
  %v1186 = vpow.pop %v1185
  %v1187 = vadd.f32 %v1180, 1.0
  %v1188 = vadd.f32 %v1182, 1.0
  %v1189 = vadd.f32 %v1184, 1.0
  %v1190 = vadd.f32 %v1186, 1.0
  %v1191 = vrcp.pop %v1187
  %v1192 = vmul.f32 %v1187, %v1191
  %v1193 = vsub.f32 1.0, %v1192
  %v1194 = vmul.f32 %v1191, %v1193
  %v1195 = vadd.f32 %v1191, %v1194
  %vm1196 = vweird.f32 %v1187
  %vm1197 = vweird.f32 %v1191
  %vm1198 = vmor %vm1196, %vm1197
  %v1199 = vsel %vm1198, %v1191, %v1195
  %v1200 = vand.u32 2147483647, %v1187
  %vm1201 = vcmp.eq.f32.partialorder %v1200, 8.507059e+37
  %v1202 = vand.u32 %v1187, 2147483648
  %v1203 = vor.u32 1.1754944e-38, %v1202
  %v1204 = vsel %vm1201, %v1203, %v1199
  %v1205 = vmul.f32 1.0, %v1204
  %v1206 = vrcp.pop %v1188
  %v1207 = vmul.f32 %v1188, %v1206
  %v1208 = vsub.f32 1.0, %v1207
  %v1209 = vmul.f32 %v1206, %v1208
  %v1210 = vadd.f32 %v1206, %v1209
  %vm1211 = vweird.f32 %v1188
  %vm1212 = vweird.f32 %v1206
  %vm1213 = vmor %vm1211, %vm1212
  %v1214 = vsel %vm1213, %v1206, %v1210
  %v1215 = vand.u32 2147483647, %v1188
  %vm1216 = vcmp.eq.f32.partialorder %v1215, 8.507059e+37
  %v1217 = vand.u32 %v1188, 2147483648
  %v1218 = vor.u32 1.1754944e-38, %v1217
  %v1219 = vsel %vm1216, %v1218, %v1214
  %v1220 = vmul.f32 1.0, %v1219
  %v1221 = vrcp.pop %v1189
  %v1222 = vmul.f32 %v1189, %v1221
  %v1223 = vsub.f32 1.0, %v1222
  %v1224 = vmul.f32 %v1221, %v1223
  %v1225 = vadd.f32 %v1221, %v1224
  %vm1226 = vweird.f32 %v1189
  %vm1227 = vweird.f32 %v1221
  %vm1228 = vmor %vm1226, %vm1227
  %v1229 = vsel %vm1228, %v1221, %v1225
  %v1230 = vand.u32 2147483647, %v1189
  %vm1231 = vcmp.eq.f32.partialorder %v1230, 8.507059e+37
  %v1232 = vand.u32 %v1189, 2147483648
  %v1233 = vor.u32 1.1754944e-38, %v1232
  %v1234 = vsel %vm1231, %v1233, %v1229
  %v1235 = vmul.f32 1.0, %v1234
  %v1236 = vrcp.pop %v1190
  %v1237 = vmul.f32 %v1190, %v1236
  %v1238 = vsub.f32 1.0, %v1237
  %v1239 = vmul.f32 %v1236, %v1238
  %v1240 = vadd.f32 %v1236, %v1239
  %vm1241 = vweird.f32 %v1190
  %vm1242 = vweird.f32 %v1236
  %vm1243 = vmor %vm1241, %vm1242
  %v1244 = vsel %vm1243, %v1236, %v1240
  %v1245 = vand.u32 2147483647, %v1190
  %vm1246 = vcmp.eq.f32.partialorder %v1245, 8.507059e+37
  %v1247 = vand.u32 %v1190, 2147483648
  %v1248 = vor.u32 1.1754944e-38, %v1247
  %v1249 = vsel %vm1246, %v1248, %v1244
  %v1250 = vmul.f32 1.0, %v1249
  %v1251 = vtanh.pop %v1171
  %v1252 = vtanh.pop %v1172
  %v1253 = vtanh.pop %v1173
  %v1254 = vtanh.pop %v1174
  %v1255 = vmul.f32 %v1205, %v1090
  %v1256 = vmul.f32 %v1220, %v1091
  %v1257 = vmul.f32 %v1235, %v1092
  %v1258 = vmul.f32 %v1250, %v1093
  %1263 = vrot.lane.b32.xlu0 %v1251, 64
  %v1264 = vpop.permute.xlu0 %1263
  %1265 = vrot.lane.b32.xlu0 %v1252, 64
  %v1266 = vpop.permute.xlu0 %1265
  %1267 = vrot.lane.b32.xlu0 %v1253, 64
  %v1268 = vpop.permute.xlu0 %1267
  %1269 = vrot.lane.b32.xlu0 %v1254, 64
  %v1270 = vpop.permute.xlu0 %1269
  %v1275 = vmul.f32 %v1205, %v1264
  %v1276 = vmul.f32 %v1220, %v1266
  %v1277 = vmul.f32 %v1235, %v1268
  %v1278 = vmul.f32 %v1250, %v1270
  %1283 = vrot.lane.b32.xlu0 %v1275, 32
  %v1284 = vpop.permute.xlu0 %1283
  %1285 = vrot.lane.b32.xlu0 %v1276, 32
  %v1286 = vpop.permute.xlu0 %1285
  %1287 = vrot.lane.b32.xlu0 %v1277, 32
  %v1288 = vpop.permute.xlu0 %1287
  %1289 = vrot.lane.b32.xlu0 %v1278, 32
  %v1290 = vpop.permute.xlu0 %1289
  %v1295 = vadd.f32 %v1255, %v1284
  %v1296 = vadd.f32 %v1256, %v1286
  %v1297 = vadd.f32 %v1257, %v1288
  %v1298 = vadd.f32 %v1258, %v1290
  %v1299 = vtanh.pop %v1295
  %v1300 = vtanh.pop %v1296
  %v1301 = vtanh.pop %v1297
  %v1302 = vtanh.pop %v1298
  %1307 = vrot.lane.b32.xlu0 %v1299, 64
  %v1308 = vpop.permute.xlu0 %1307
  %1309 = vrot.lane.b32.xlu0 %v1300, 64
  %v1310 = vpop.permute.xlu0 %1309
  %1311 = vrot.lane.b32.xlu0 %v1301, 64
  %v1312 = vpop.permute.xlu0 %1311
  %1313 = vrot.lane.b32.xlu0 %v1302, 64
  %v1314 = vpop.permute.xlu0 %1313
  %v1319 = vmul.f32 %v1205, %v1308
  %v1320 = vmul.f32 %v1220, %v1310
  %v1321 = vmul.f32 %v1235, %v1312
  %v1322 = vmul.f32 %v1250, %v1314
  %v1323 = vld [vmem:[#allocation2 + $0xa0] sm:$0xff]
  %v1324 = vld [vmem:[#allocation2 + $0xa8] sm:$0xff]
  %v1325 = vld [vmem:[#allocation2 + $0xb0] sm:$0xff]
  %v1326 = vld [vmem:[#allocation2 + $0xb8] sm:$0xff]
  %1331 = vrot.lane.b32.xlu0 %v1319, 32
  %v1332 = vpop.permute.xlu0 %1331
  %1333 = vrot.lane.b32.xlu0 %v1320, 32
  %v1334 = vpop.permute.xlu0 %1333
  %1335 = vrot.lane.b32.xlu0 %v1321, 32
  %v1336 = vpop.permute.xlu0 %1335
  %1337 = vrot.lane.b32.xlu0 %v1322, 32
  %v1338 = vpop.permute.xlu0 %1337
  %v1339 = vsel %vm318, %v1332, 0
  %v1341 = vsel %vm318, %v1334, 0
  %v1343 = vsel %vm318, %v1336, 0
  %v1345 = vsel %vm318, %v1338, 0
  %1347 = vmatpush.msra.mxu0 0.0
  %1348 = vmatpush.msra.mxu0 0.0
  %1349 = vmatpush.msra.mxu0 0.0
  %1350 = vmatpush.msra.mxu0 0.0
  %1351 = vmatpush.msra.mxu0 0.0
  %1352 = vmatpush.msra.mxu0 0.0
  %1353 = vmatpush.msra.mxu0 0.0
  %1354 = vmatpush.msra.mxu0 0.0
  %1355 = vmatpush.msra.mxu0 0.0
  %1356 = vmatpush.msra.mxu0 0.0
  %1357 = vmatpush.msra.mxu0 0.0
  %1358 = vmatpush.msra.mxu0 0.0
  %1359 = vmatpush.msra.mxu0 %v28
  %1360 = vmatpush.msra.mxu0 %v27
  %1361 = vmatpush.msra.mxu0 %v26
  %1362 = vmatpush.msra.mxu0 %v25
  %1363 = vmatmul.f32.gmra.mxu0 %v1339
  %v1364 = vpop.f32.mrf.mxu0
  %v1365 = vadd.f32 0.0, %v1364
  %1366 = vmatmul.f32.gmra.mxu0 %v1341
  %v1367 = vpop.f32.mrf.mxu0
  %v1368 = vadd.f32 0.0, %v1367
  %1369 = vmatmul.f32.gmra.mxu0 %v1343
  %v1370 = vpop.f32.mrf.mxu0
  %v1371 = vadd.f32 0.0, %v1370
  %1372 = vmatmul.f32.gmra.mxu0 %v1345
  %v1373 = vpop.f32.mrf.mxu0
  %v1374 = vadd.f32 0.0, %v1373
  %1375 = vdwg.mxu0
  %v1376 = vadd.f32 %v1323, %v1365
  %v1377 = vadd.f32 %v1324, %v1368
  %v1378 = vadd.f32 %v1325, %v1371
  %v1379 = vadd.f32 %v1326, %v1374
  %v1380 = vxor.u32 %v1376, 2147483648
  %v1381 = vxor.u32 %v1377, 2147483648
  %v1382 = vxor.u32 %v1378, 2147483648
  %v1383 = vxor.u32 %v1379, 2147483648
  %v1384 = vmul.f32 %v1380, 1.442695
  %v1385 = vpow.pop %v1384
  %v1386 = vmul.f32 %v1381, 1.442695
  %v1387 = vpow.pop %v1386
  %v1388 = vmul.f32 %v1382, 1.442695
  %v1389 = vpow.pop %v1388
  %v1390 = vmul.f32 %v1383, 1.442695
  %v1391 = vpow.pop %v1390
  %v1392 = vadd.f32 %v1385, 1.0
  %v1393 = vadd.f32 %v1387, 1.0
  %v1394 = vadd.f32 %v1389, 1.0
  %v1395 = vadd.f32 %v1391, 1.0
  %v1396 = vrcp.pop %v1392
  %v1397 = vmul.f32 %v1392, %v1396
  %v1398 = vsub.f32 1.0, %v1397
  %v1399 = vmul.f32 %v1396, %v1398
  %v1400 = vadd.f32 %v1396, %v1399
  %vm1401 = vweird.f32 %v1392
  %vm1402 = vweird.f32 %v1396
  %vm1403 = vmor %vm1401, %vm1402
  %v1404 = vsel %vm1403, %v1396, %v1400
  %v1405 = vand.u32 2147483647, %v1392
  %vm1406 = vcmp.eq.f32.partialorder %v1405, 8.507059e+37
  %v1407 = vand.u32 %v1392, 2147483648
  %v1408 = vor.u32 1.1754944e-38, %v1407
  %v1409 = vsel %vm1406, %v1408, %v1404
  %v1410 = vmul.f32 1.0, %v1409
  %v1411 = vrcp.pop %v1393
  %v1412 = vmul.f32 %v1393, %v1411
  %v1413 = vsub.f32 1.0, %v1412
  %v1414 = vmul.f32 %v1411, %v1413
  %v1415 = vadd.f32 %v1411, %v1414
  %vm1416 = vweird.f32 %v1393
  %vm1417 = vweird.f32 %v1411
  %vm1418 = vmor %vm1416, %vm1417
  %v1419 = vsel %vm1418, %v1411, %v1415
  %v1420 = vand.u32 2147483647, %v1393
  %vm1421 = vcmp.eq.f32.partialorder %v1420, 8.507059e+37
  %v1422 = vand.u32 %v1393, 2147483648
  %v1423 = vor.u32 1.1754944e-38, %v1422
  %v1424 = vsel %vm1421, %v1423, %v1419
  %v1425 = vmul.f32 1.0, %v1424
  %v1426 = vrcp.pop %v1394
  %v1427 = vmul.f32 %v1394, %v1426
  %v1428 = vsub.f32 1.0, %v1427
  %v1429 = vmul.f32 %v1426, %v1428
  %v1430 = vadd.f32 %v1426, %v1429
  %vm1431 = vweird.f32 %v1394
  %vm1432 = vweird.f32 %v1426
  %vm1433 = vmor %vm1431, %vm1432
  %v1434 = vsel %vm1433, %v1426, %v1430
  %v1435 = vand.u32 2147483647, %v1394
  %vm1436 = vcmp.eq.f32.partialorder %v1435, 8.507059e+37
  %v1437 = vand.u32 %v1394, 2147483648
  %v1438 = vor.u32 1.1754944e-38, %v1437
  %v1439 = vsel %vm1436, %v1438, %v1434
  %v1440 = vmul.f32 1.0, %v1439
  %v1441 = vrcp.pop %v1395
  %v1442 = vmul.f32 %v1395, %v1441
  %v1443 = vsub.f32 1.0, %v1442
  %v1444 = vmul.f32 %v1441, %v1443
  %v1445 = vadd.f32 %v1441, %v1444
  %vm1446 = vweird.f32 %v1395
  %vm1447 = vweird.f32 %v1441
  %vm1448 = vmor %vm1446, %vm1447
  %v1449 = vsel %vm1448, %v1441, %v1445
  %v1450 = vand.u32 2147483647, %v1395
  %vm1451 = vcmp.eq.f32.partialorder %v1450, 8.507059e+37
  %v1452 = vand.u32 %v1395, 2147483648
  %v1453 = vor.u32 1.1754944e-38, %v1452
  %v1454 = vsel %vm1451, %v1453, %v1449
  %v1455 = vmul.f32 1.0, %v1454
  %v1456 = vtanh.pop %v1376
  %v1457 = vtanh.pop %v1377
  %v1458 = vtanh.pop %v1378
  %v1459 = vtanh.pop %v1379
  %v1460 = vmul.f32 %v1410, %v1295
  %v1461 = vmul.f32 %v1425, %v1296
  %v1462 = vmul.f32 %v1440, %v1297
  %v1463 = vmul.f32 %v1455, %v1298
  %1468 = vrot.lane.b32.xlu0 %v1456, 64
  %v1469 = vpop.permute.xlu0 %1468
  %1470 = vrot.lane.b32.xlu0 %v1457, 64
  %v1471 = vpop.permute.xlu0 %1470
  %1472 = vrot.lane.b32.xlu0 %v1458, 64
  %v1473 = vpop.permute.xlu0 %1472
  %1474 = vrot.lane.b32.xlu0 %v1459, 64
  %v1475 = vpop.permute.xlu0 %1474
  %v1480 = vmul.f32 %v1410, %v1469
  %v1481 = vmul.f32 %v1425, %v1471
  %v1482 = vmul.f32 %v1440, %v1473
  %v1483 = vmul.f32 %v1455, %v1475
  %1488 = vrot.lane.b32.xlu0 %v1480, 32
  %v1489 = vpop.permute.xlu0 %1488
  %1490 = vrot.lane.b32.xlu0 %v1481, 32
  %v1491 = vpop.permute.xlu0 %1490
  %1492 = vrot.lane.b32.xlu0 %v1482, 32
  %v1493 = vpop.permute.xlu0 %1492
  %1494 = vrot.lane.b32.xlu0 %v1483, 32
  %v1495 = vpop.permute.xlu0 %1494
  %v1500 = vadd.f32 %v1460, %v1489
  %v1501 = vadd.f32 %v1461, %v1491
  %v1502 = vadd.f32 %v1462, %v1493
  %v1503 = vadd.f32 %v1463, %v1495
  %v1504 = vtanh.pop %v1500
  %v1505 = vtanh.pop %v1501
  %v1506 = vtanh.pop %v1502
  %v1507 = vtanh.pop %v1503
  %1512 = vrot.lane.b32.xlu0 %v1504, 64
  %v1513 = vpop.permute.xlu0 %1512
  %1514 = vrot.lane.b32.xlu0 %v1505, 64
  %v1515 = vpop.permute.xlu0 %1514
  %1516 = vrot.lane.b32.xlu0 %v1506, 64
  %v1517 = vpop.permute.xlu0 %1516
  %1518 = vrot.lane.b32.xlu0 %v1507, 64
  %v1519 = vpop.permute.xlu0 %1518
  %v1524 = vmul.f32 %v1410, %v1513
  %v1525 = vmul.f32 %v1425, %v1515
  %v1526 = vmul.f32 %v1440, %v1517
  %v1527 = vmul.f32 %v1455, %v1519
  %v1528 = vld [vmem:[#allocation2 + $0xc0] sm:$0xff]
  %v1529 = vld [vmem:[#allocation2 + $0xc8] sm:$0xff]
  %v1530 = vld [vmem:[#allocation2 + $0xd0] sm:$0xff]
  %v1531 = vld [vmem:[#allocation2 + $0xd8] sm:$0xff]
  %1536 = vrot.lane.b32.xlu0 %v1524, 32
  %v1537 = vpop.permute.xlu0 %1536
  %1538 = vrot.lane.b32.xlu0 %v1525, 32
  %v1539 = vpop.permute.xlu0 %1538
  %1540 = vrot.lane.b32.xlu0 %v1526, 32
  %v1541 = vpop.permute.xlu0 %1540
  %1542 = vrot.lane.b32.xlu0 %v1527, 32
  %v1543 = vpop.permute.xlu0 %1542
  %v1544 = vsel %vm318, %v1537, 0
  %v1546 = vsel %vm318, %v1539, 0
  %v1548 = vsel %vm318, %v1541, 0
  %v1550 = vsel %vm318, %v1543, 0
  %1552 = vmatpush.msra.mxu0 0.0
  %1553 = vmatpush.msra.mxu0 0.0
  %1554 = vmatpush.msra.mxu0 0.0
  %1555 = vmatpush.msra.mxu0 0.0
  %1556 = vmatpush.msra.mxu0 0.0
  %1557 = vmatpush.msra.mxu0 0.0
  %1558 = vmatpush.msra.mxu0 0.0
  %1559 = vmatpush.msra.mxu0 0.0
  %1560 = vmatpush.msra.mxu0 0.0
  %1561 = vmatpush.msra.mxu0 0.0
  %1562 = vmatpush.msra.mxu0 0.0
  %1563 = vmatpush.msra.mxu0 0.0
  %1564 = vmatpush.msra.mxu0 %v28
  %1565 = vmatpush.msra.mxu0 %v27
  %1566 = vmatpush.msra.mxu0 %v26
  %1567 = vmatpush.msra.mxu0 %v25
  %1568 = vmatmul.f32.gmra.mxu0 %v1544
  %v1569 = vpop.f32.mrf.mxu0
  %v1570 = vadd.f32 0.0, %v1569
  %1571 = vmatmul.f32.gmra.mxu0 %v1546
  %v1572 = vpop.f32.mrf.mxu0
  %v1573 = vadd.f32 0.0, %v1572
  %1574 = vmatmul.f32.gmra.mxu0 %v1548
  %v1575 = vpop.f32.mrf.mxu0
  %v1576 = vadd.f32 0.0, %v1575
  %1577 = vmatmul.f32.gmra.mxu0 %v1550
  %v1578 = vpop.f32.mrf.mxu0
  %v1579 = vadd.f32 0.0, %v1578
  %1580 = vdwg.mxu0
  %v1581 = vadd.f32 %v1528, %v1570
  %v1582 = vadd.f32 %v1529, %v1573
  %v1583 = vadd.f32 %v1530, %v1576
  %v1584 = vadd.f32 %v1531, %v1579
  %v1585 = vxor.u32 %v1581, 2147483648
  %v1586 = vxor.u32 %v1582, 2147483648
  %v1587 = vxor.u32 %v1583, 2147483648
  %v1588 = vxor.u32 %v1584, 2147483648
  %v1589 = vmul.f32 %v1585, 1.442695
  %v1590 = vpow.pop %v1589
  %v1591 = vmul.f32 %v1586, 1.442695
  %v1592 = vpow.pop %v1591
  %v1593 = vmul.f32 %v1587, 1.442695
  %v1594 = vpow.pop %v1593
  %v1595 = vmul.f32 %v1588, 1.442695
  %v1596 = vpow.pop %v1595
  %v1597 = vadd.f32 %v1590, 1.0
  %v1598 = vadd.f32 %v1592, 1.0
  %v1599 = vadd.f32 %v1594, 1.0
  %v1600 = vadd.f32 %v1596, 1.0
  %v1601 = vrcp.pop %v1597
  %v1602 = vmul.f32 %v1597, %v1601
  %v1603 = vsub.f32 1.0, %v1602
  %v1604 = vmul.f32 %v1601, %v1603
  %v1605 = vadd.f32 %v1601, %v1604
  %vm1606 = vweird.f32 %v1597
  %vm1607 = vweird.f32 %v1601
  %vm1608 = vmor %vm1606, %vm1607
  %v1609 = vsel %vm1608, %v1601, %v1605
  %v1610 = vand.u32 2147483647, %v1597
  %vm1611 = vcmp.eq.f32.partialorder %v1610, 8.507059e+37
  %v1612 = vand.u32 %v1597, 2147483648
  %v1613 = vor.u32 1.1754944e-38, %v1612
  %v1614 = vsel %vm1611, %v1613, %v1609
  %v1615 = vmul.f32 1.0, %v1614
  %v1616 = vrcp.pop %v1598
  %v1617 = vmul.f32 %v1598, %v1616
  %v1618 = vsub.f32 1.0, %v1617
  %v1619 = vmul.f32 %v1616, %v1618
  %v1620 = vadd.f32 %v1616, %v1619
  %vm1621 = vweird.f32 %v1598
  %vm1622 = vweird.f32 %v1616
  %vm1623 = vmor %vm1621, %vm1622
  %v1624 = vsel %vm1623, %v1616, %v1620
  %v1625 = vand.u32 2147483647, %v1598
  %vm1626 = vcmp.eq.f32.partialorder %v1625, 8.507059e+37
  %v1627 = vand.u32 %v1598, 2147483648
  %v1628 = vor.u32 1.1754944e-38, %v1627
  %v1629 = vsel %vm1626, %v1628, %v1624
  %v1630 = vmul.f32 1.0, %v1629
  %v1631 = vrcp.pop %v1599
  %v1632 = vmul.f32 %v1599, %v1631
  %v1633 = vsub.f32 1.0, %v1632
  %v1634 = vmul.f32 %v1631, %v1633
  %v1635 = vadd.f32 %v1631, %v1634
  %vm1636 = vweird.f32 %v1599
  %vm1637 = vweird.f32 %v1631
  %vm1638 = vmor %vm1636, %vm1637
  %v1639 = vsel %vm1638, %v1631, %v1635
  %v1640 = vand.u32 2147483647, %v1599
  %vm1641 = vcmp.eq.f32.partialorder %v1640, 8.507059e+37
  %v1642 = vand.u32 %v1599, 2147483648
  %v1643 = vor.u32 1.1754944e-38, %v1642
  %v1644 = vsel %vm1641, %v1643, %v1639
  %v1645 = vmul.f32 1.0, %v1644
  %v1646 = vrcp.pop %v1600
  %v1647 = vmul.f32 %v1600, %v1646
  %v1648 = vsub.f32 1.0, %v1647
  %v1649 = vmul.f32 %v1646, %v1648
  %v1650 = vadd.f32 %v1646, %v1649
  %vm1651 = vweird.f32 %v1600
  %vm1652 = vweird.f32 %v1646
  %vm1653 = vmor %vm1651, %vm1652
  %v1654 = vsel %vm1653, %v1646, %v1650
  %v1655 = vand.u32 2147483647, %v1600
  %vm1656 = vcmp.eq.f32.partialorder %v1655, 8.507059e+37
  %v1657 = vand.u32 %v1600, 2147483648
  %v1658 = vor.u32 1.1754944e-38, %v1657
  %v1659 = vsel %vm1656, %v1658, %v1654
  %v1660 = vmul.f32 1.0, %v1659
  %v1661 = vtanh.pop %v1581
  %v1662 = vtanh.pop %v1582
  %v1663 = vtanh.pop %v1583
  %v1664 = vtanh.pop %v1584
  %v1665 = vmul.f32 %v1615, %v1500
  %v1666 = vmul.f32 %v1630, %v1501
  %v1667 = vmul.f32 %v1645, %v1502
  %v1668 = vmul.f32 %v1660, %v1503
  %1673 = vrot.lane.b32.xlu0 %v1661, 64
  %v1674 = vpop.permute.xlu0 %1673
  %1675 = vrot.lane.b32.xlu0 %v1662, 64
  %v1676 = vpop.permute.xlu0 %1675
  %1677 = vrot.lane.b32.xlu0 %v1663, 64
  %v1678 = vpop.permute.xlu0 %1677
  %1679 = vrot.lane.b32.xlu0 %v1664, 64
  %v1680 = vpop.permute.xlu0 %1679
  %v1685 = vmul.f32 %v1615, %v1674
  %v1686 = vmul.f32 %v1630, %v1676
  %v1687 = vmul.f32 %v1645, %v1678
  %v1688 = vmul.f32 %v1660, %v1680
  %1693 = vrot.lane.b32.xlu0 %v1685, 32
  %v1694 = vpop.permute.xlu0 %1693
  %1695 = vrot.lane.b32.xlu0 %v1686, 32
  %v1696 = vpop.permute.xlu0 %1695
  %1697 = vrot.lane.b32.xlu0 %v1687, 32
  %v1698 = vpop.permute.xlu0 %1697
  %1699 = vrot.lane.b32.xlu0 %v1688, 32
  %v1700 = vpop.permute.xlu0 %1699
  %v1705 = vadd.f32 %v1665, %v1694
  %v1706 = vadd.f32 %v1666, %v1696
  %v1707 = vadd.f32 %v1667, %v1698
  %v1708 = vadd.f32 %v1668, %v1700
  %v1709 = vtanh.pop %v1705
  %v1710 = vtanh.pop %v1706
  %v1711 = vtanh.pop %v1707
  %v1712 = vtanh.pop %v1708
  %1717 = vrot.lane.b32.xlu0 %v1709, 64
  %v1718 = vpop.permute.xlu0 %1717
  %1719 = vrot.lane.b32.xlu0 %v1710, 64
  %v1720 = vpop.permute.xlu0 %1719
  %1721 = vrot.lane.b32.xlu0 %v1711, 64
  %v1722 = vpop.permute.xlu0 %1721
  %1723 = vrot.lane.b32.xlu0 %v1712, 64
  %v1724 = vpop.permute.xlu0 %1723
  %v1729 = vmul.f32 %v1615, %v1718
  %v1730 = vmul.f32 %v1630, %v1720
  %v1731 = vmul.f32 %v1645, %v1722
  %v1732 = vmul.f32 %v1660, %v1724
  %v1733 = vld [vmem:[#allocation2 + $0xe0] sm:$0xff]
  %v1734 = vld [vmem:[#allocation2 + $0xe8] sm:$0xff]
  %v1735 = vld [vmem:[#allocation2 + $0xf0] sm:$0xff]
  %v1736 = vld [vmem:[#allocation2 + $0xf8] sm:$0xff]
  %1741 = vrot.lane.b32.xlu0 %v1729, 32
  %v1742 = vpop.permute.xlu0 %1741
  %1743 = vrot.lane.b32.xlu0 %v1730, 32
  %v1744 = vpop.permute.xlu0 %1743
  %1745 = vrot.lane.b32.xlu0 %v1731, 32
  %v1746 = vpop.permute.xlu0 %1745
  %1747 = vrot.lane.b32.xlu0 %v1732, 32
  %v1748 = vpop.permute.xlu0 %1747
  %v1749 = vsel %vm318, %v1742, 0
  %v1751 = vsel %vm318, %v1744, 0
  %v1753 = vsel %vm318, %v1746, 0
  %v1755 = vsel %vm318, %v1748, 0
  %1757 = vmatpush.msra.mxu0 0.0
  %1758 = vmatpush.msra.mxu0 0.0
  %1759 = vmatpush.msra.mxu0 0.0
  %1760 = vmatpush.msra.mxu0 0.0
  %1761 = vmatpush.msra.mxu0 0.0
  %1762 = vmatpush.msra.mxu0 0.0
  %1763 = vmatpush.msra.mxu0 0.0
  %1764 = vmatpush.msra.mxu0 0.0
  %1765 = vmatpush.msra.mxu0 0.0
  %1766 = vmatpush.msra.mxu0 0.0
  %1767 = vmatpush.msra.mxu0 0.0
  %1768 = vmatpush.msra.mxu0 0.0
  %1769 = vmatpush.msra.mxu0 %v28
  %1770 = vmatpush.msra.mxu0 %v27
  %1771 = vmatpush.msra.mxu0 %v26
  %1772 = vmatpush.msra.mxu0 %v25
  %1773 = vmatmul.f32.gmra.mxu0 %v1749
  %v1774 = vpop.f32.mrf.mxu0
  %v1775 = vadd.f32 0.0, %v1774
  %1776 = vmatmul.f32.gmra.mxu0 %v1751
  %v1777 = vpop.f32.mrf.mxu0
  %v1778 = vadd.f32 0.0, %v1777
  %1779 = vmatmul.f32.gmra.mxu0 %v1753
  %v1780 = vpop.f32.mrf.mxu0
  %v1781 = vadd.f32 0.0, %v1780
  %1782 = vmatmul.f32.gmra.mxu0 %v1755
  %v1783 = vpop.f32.mrf.mxu0
  %v1784 = vadd.f32 0.0, %v1783
  %1785 = vdwg.mxu0
  %v1786 = vadd.f32 %v1733, %v1775
  %v1787 = vadd.f32 %v1734, %v1778
  %v1788 = vadd.f32 %v1735, %v1781
  %v1789 = vadd.f32 %v1736, %v1784
  %v1790 = vxor.u32 %v1786, 2147483648
  %v1791 = vxor.u32 %v1787, 2147483648
  %v1792 = vxor.u32 %v1788, 2147483648
  %v1793 = vxor.u32 %v1789, 2147483648
  %v1794 = vmul.f32 %v1790, 1.442695
  %v1795 = vpow.pop %v1794
  %v1796 = vmul.f32 %v1791, 1.442695
  %v1797 = vpow.pop %v1796
  %v1798 = vmul.f32 %v1792, 1.442695
  %v1799 = vpow.pop %v1798
  %v1800 = vmul.f32 %v1793, 1.442695
  %v1801 = vpow.pop %v1800
  %v1802 = vadd.f32 %v1795, 1.0
  %v1803 = vadd.f32 %v1797, 1.0
  %v1804 = vadd.f32 %v1799, 1.0
  %v1805 = vadd.f32 %v1801, 1.0
  %v1806 = vrcp.pop %v1802
  %v1807 = vmul.f32 %v1802, %v1806
  %v1808 = vsub.f32 1.0, %v1807
  %v1809 = vmul.f32 %v1806, %v1808
  %v1810 = vadd.f32 %v1806, %v1809
  %vm1811 = vweird.f32 %v1802
  %vm1812 = vweird.f32 %v1806
  %vm1813 = vmor %vm1811, %vm1812
  %v1814 = vsel %vm1813, %v1806, %v1810
  %v1815 = vand.u32 2147483647, %v1802
  %vm1816 = vcmp.eq.f32.partialorder %v1815, 8.507059e+37
  %v1817 = vand.u32 %v1802, 2147483648
  %v1818 = vor.u32 1.1754944e-38, %v1817
  %v1819 = vsel %vm1816, %v1818, %v1814
  %v1820 = vmul.f32 1.0, %v1819
  %v1821 = vrcp.pop %v1803
  %v1822 = vmul.f32 %v1803, %v1821
  %v1823 = vsub.f32 1.0, %v1822
  %v1824 = vmul.f32 %v1821, %v1823
  %v1825 = vadd.f32 %v1821, %v1824
  %vm1826 = vweird.f32 %v1803
  %vm1827 = vweird.f32 %v1821
  %vm1828 = vmor %vm1826, %vm1827
  %v1829 = vsel %vm1828, %v1821, %v1825
  %v1830 = vand.u32 2147483647, %v1803
  %vm1831 = vcmp.eq.f32.partialorder %v1830, 8.507059e+37
  %v1832 = vand.u32 %v1803, 2147483648
  %v1833 = vor.u32 1.1754944e-38, %v1832
  %v1834 = vsel %vm1831, %v1833, %v1829
  %v1835 = vmul.f32 1.0, %v1834
  %v1836 = vrcp.pop %v1804
  %v1837 = vmul.f32 %v1804, %v1836
  %v1838 = vsub.f32 1.0, %v1837
  %v1839 = vmul.f32 %v1836, %v1838
  %v1840 = vadd.f32 %v1836, %v1839
  %vm1841 = vweird.f32 %v1804
  %vm1842 = vweird.f32 %v1836
  %vm1843 = vmor %vm1841, %vm1842
  %v1844 = vsel %vm1843, %v1836, %v1840
  %v1845 = vand.u32 2147483647, %v1804
  %vm1846 = vcmp.eq.f32.partialorder %v1845, 8.507059e+37
  %v1847 = vand.u32 %v1804, 2147483648
  %v1848 = vor.u32 1.1754944e-38, %v1847
  %v1849 = vsel %vm1846, %v1848, %v1844
  %v1850 = vmul.f32 1.0, %v1849
  %v1851 = vrcp.pop %v1805
  %v1852 = vmul.f32 %v1805, %v1851
  %v1853 = vsub.f32 1.0, %v1852
  %v1854 = vmul.f32 %v1851, %v1853
  %v1855 = vadd.f32 %v1851, %v1854
  %vm1856 = vweird.f32 %v1805
  %vm1857 = vweird.f32 %v1851
  %vm1858 = vmor %vm1856, %vm1857
  %v1859 = vsel %vm1858, %v1851, %v1855
  %v1860 = vand.u32 2147483647, %v1805
  %vm1861 = vcmp.eq.f32.partialorder %v1860, 8.507059e+37
  %v1862 = vand.u32 %v1805, 2147483648
  %v1863 = vor.u32 1.1754944e-38, %v1862
  %v1864 = vsel %vm1861, %v1863, %v1859
  %v1865 = vmul.f32 1.0, %v1864
  %v1866 = vtanh.pop %v1786
  %v1867 = vtanh.pop %v1787
  %v1868 = vtanh.pop %v1788
  %v1869 = vtanh.pop %v1789
  %v1870 = vmul.f32 %v1820, %v1705
  %v1871 = vmul.f32 %v1835, %v1706
  %v1872 = vmul.f32 %v1850, %v1707
  %v1873 = vmul.f32 %v1865, %v1708
  %1878 = vrot.lane.b32.xlu0 %v1866, 64
  %v1879 = vpop.permute.xlu0 %1878
  %1880 = vrot.lane.b32.xlu0 %v1867, 64
  %v1881 = vpop.permute.xlu0 %1880
  %1882 = vrot.lane.b32.xlu0 %v1868, 64
  %v1883 = vpop.permute.xlu0 %1882
  %1884 = vrot.lane.b32.xlu0 %v1869, 64
  %v1885 = vpop.permute.xlu0 %1884
  %v1890 = vmul.f32 %v1820, %v1879
  %v1891 = vmul.f32 %v1835, %v1881
  %v1892 = vmul.f32 %v1850, %v1883
  %v1893 = vmul.f32 %v1865, %v1885
  %1898 = vrot.lane.b32.xlu0 %v1890, 32
  %v1899 = vpop.permute.xlu0 %1898
  %1900 = vrot.lane.b32.xlu0 %v1891, 32
  %v1901 = vpop.permute.xlu0 %1900
  %1902 = vrot.lane.b32.xlu0 %v1892, 32
  %v1903 = vpop.permute.xlu0 %1902
  %1904 = vrot.lane.b32.xlu0 %v1893, 32
  %v1905 = vpop.permute.xlu0 %1904
  %v1910 = vadd.f32 %v1870, %v1899
  %v1911 = vadd.f32 %v1871, %v1901
  %v1912 = vadd.f32 %v1872, %v1903
  %v1913 = vadd.f32 %v1873, %v1905
  %v1914 = vtanh.pop %v1910
  %v1915 = vtanh.pop %v1911
  %v1916 = vtanh.pop %v1912
  %v1917 = vtanh.pop %v1913
  %1922 = vrot.lane.b32.xlu0 %v1914, 64
  %v1923 = vpop.permute.xlu0 %1922
  %1924 = vrot.lane.b32.xlu0 %v1915, 64
  %v1925 = vpop.permute.xlu0 %1924
  %1926 = vrot.lane.b32.xlu0 %v1916, 64
  %v1927 = vpop.permute.xlu0 %1926
  %1928 = vrot.lane.b32.xlu0 %v1917, 64
  %v1929 = vpop.permute.xlu0 %1928
  %v1934 = vmul.f32 %v1820, %v1923
  %v1935 = vmul.f32 %v1835, %v1925
  %v1936 = vmul.f32 %v1850, %v1927
  %v1937 = vmul.f32 %v1865, %v1929
  %v1939 = vperm.slane %v29, 0
  %1940 = vrot.lane.b32.xlu0 %v1939, 96
  %v1941 = vpop.permute.xlu0 %1940
  %v1943 = vmul.f32 %v1934, %v1941
  %v1944 = vmul.f32 %v1935, %v1941
  %v1945 = vmul.f32 %v1936, %v1941
  %v1946 = vmul.f32 %v1937, %v1941
  %1951 = vrot.lane.b32.xlu0 %v1943, 32
  %v1952 = vpop.permute.xlu0 %1951
  %1953 = vrot.lane.b32.xlu0 %v1944, 32
  %v1954 = vpop.permute.xlu0 %1953
  %1955 = vrot.lane.b32.xlu0 %v1945, 32
  %v1956 = vpop.permute.xlu0 %1955
  %1957 = vrot.lane.b32.xlu0 %v1946, 32
  %v1958 = vpop.permute.xlu0 %1957
  %v1963 = vsel %vm318, %v1952, 0.0
  %1964 = vadd.xlane.f32.xlu0 %v1963
  %v1965 = vpop.xlane.xlu0 %1964
  %v1966 = vsel %vm318, %v1954, 0.0
  %1967 = vadd.xlane.f32.xlu0 %v1966
  %v1968 = vpop.xlane.xlu0 %1967
  %v1969 = vsel %vm318, %v1956, 0.0
  %1970 = vadd.xlane.f32.xlu0 %v1969
  %v1971 = vpop.xlane.xlu0 %1970
  %v1972 = vsel %vm318, %v1958, 0.0
  %1973 = vadd.xlane.f32.xlu0 %v1972
  %v1974 = vpop.xlane.xlu0 %1973
  %v1976 = vperm.slane %v30, 0
  %v1978 = vadd.f32 %v1965, %v1976
  %v1979 = vadd.f32 %v1968, %v1976
  %v1980 = vadd.f32 %v1971, %v1976
  %v1981 = vadd.f32 %v1974, %v1976
  %vm1982 = vcmask 7168
  %1983 = vst.msk [vmem:[%s6] sm:$0xff] %vm1982, %v1978
  %1984 = vst.msk [vmem:[%s6 + $0x8] sm:$0xff] %vm1982, %v1979
  %1985 = vst.msk [vmem:[%s6 + $0x10] sm:$0xff] %vm1982, %v1980
  %1986 = vst.msk [vmem:[%s6 + $0x18] sm:$0xff] %vm1982, %v1981
  // Predicated region
  $region26: #{rnn_forward.1} parent=0 // pred_check
    _
  $region27: #{rnn_forward.1} parent=0 // pred_check_branch
    %1988 = sbr.rel (0) target = $region29
  $region28: #{rnn_forward.1} parent=0 // pred_region
    _
  $region29: #{rnn_forward.1} parent=0 // pred_fallthru
    _
  // Predicated region
  $region30: #{rnn_forward.1} parent=0 // pred_check
    _
  $region31: #{rnn_forward.1} parent=0 // pred_check_branch
    %1990 = sbr.rel (0) target = $region33
  $region32: #{rnn_forward.1} parent=0 // pred_region
    _
  $region33: #{rnn_forward.1} parent=0 // pred_fallthru
    _

</llo_original>
